<compile_context>
chip_gen: v5e
topology: v5e:2x2
jax: 0.10.0
libtpu: 0.0.40
codegen_flags: <defaults>
</compile_context>

<pallas_src>
import functools

import jax
import jax.numpy as jnp
from jax import lax
from jax.experimental import pallas as pl
from jax.experimental.pallas import tpu as pltpu

EPS = 1e-5
LANE = 128


def _round_up(x, m):
    return (x + m - 1) // m * m


# ----------------------------- fused Pallas kernel ---------------------------

def _adconv_kernel(x_ref, w1_ref, w2_ref, b2_ref, o_ref, ybuf_ref, *,
                   h, wp8, cout, cout_p, packed2, rows_per_chunk):
    """Fused ADConv forward for one batch element.

    x_ref   : (h*wp8, K1p)   im2col'd input patches (+ constant bias/validity lane)
    w1_ref  : (K1p, cout_p)  stage-1 weights (BN scale + bias folded, lane-replicated)
    w2_ref  : packed: (cout_p, 2*cout_p) | fallback: (6*cout_p, cout_p)
    b2_ref  : packed: (1, 2*cout_p)      | fallback: (2, cout_p)        (f32 biases)
    o_ref   : (h*wp8, cout_p) f32 output (pad columns sliced off by the wrapper)
    ybuf_ref: ((h+3)*wp8, cout_p) f32 VMEM scratch holding the padded intermediate y
    """
    hw2 = h * wp8
    cdt = w2_ref.dtype                      # MXU operand dtype (bf16 by default)

    # ---------------- stage 1: conv3x3 + BN + ReLU (one packed-K dot) --------
    y = jnp.dot(x_ref[...], w1_ref[...], preferred_element_type=jnp.float32)
    y = jnp.maximum(y, 0.0)                 # bias/scale already folded; pad rows == 0

    # Zero only the halo rows (top pad row, bottom pad + tap-overrun margin); the
    # interior is fully overwritten by the store below.  Done every step on purpose:
    # scratch is per-core under "parallel" grid sharding.
    ybuf_ref[pl.ds(0, wp8), :] = jnp.zeros((wp8, cout_p), jnp.float32)
    ybuf_ref[pl.ds((h + 1) * wp8, 2 * wp8), :] = jnp.zeros((2 * wp8, cout_p), jnp.float32)
    ybuf_ref[pl.ds(wp8, hw2), :] = y        # 8-aligned store (wp8 % 8 == 0)

    # ---------------- stage 2: Double13, chunked over image rows -------------
    lane = lax.broadcasted_iota(jnp.int32, (1, cout_p), 1)   # hoisted out of the loops
    for i0 in range(0, h, rows_per_chunk):
        mc = min(rows_per_chunk, h - i0) * wp8
        base = i0 * wp8
        if packed2:
            # Gather the 3x3 y-neighbourhood into lane blocks [t*cout, (t+1)*cout)
            # (y is lane-replicated, so this is selects + row-shifted loads, no rolls).
            patch = jnp.zeros((mc, cout_p), jnp.float32)
            for t in range(9):
                dh, dw = divmod(t, 3)
                sl = ybuf_ref[pl.ds(base + dh * wp8 + dw, mc), :]
                blk = (lane >= t * cout) & (lane < (t + 1) * cout)
                patch = patch + jnp.where(blk, sl, 0.0)
            # Both branches in ONE dot: N = 2*cout_p (256-wide on the v6e/v7x MXU).
            z = jnp.dot(patch.astype(cdt), w2_ref[...],
                        preferred_element_type=jnp.float32) + b2_ref[...]
            o_ref[pl.ds(base, mc), :] = (jnp.maximum(z[:, :cout_p], 0.0)
                                         + jnp.maximum(z[:, cout_p:], 0.0))
        else:
            # Large-Cout fallback: shifted-window dots (K = cout_p per tap).
            za = jnp.zeros((mc, cout_p), jnp.float32)
            zb = jnp.zeros((mc, cout_p), jnp.float32)
            for dw in range(3):                              # 1x3 branch, taps (1, dw)
                sl = ybuf_ref[pl.ds(base + wp8 + dw, mc), :].astype(cdt)
                za = za + jnp.dot(sl, w2_ref[pl.ds(dw * cout_p, cout_p), :],
                                  preferred_element_type=jnp.float32)
            for dh in range(3):                              # 3x1 branch, taps (dh, 1)
                sl = ybuf_ref[pl.ds(base + dh * wp8 + 1, mc), :].astype(cdt)
                zb = zb + jnp.dot(sl, w2_ref[pl.ds((3 + dh) * cout_p, cout_p), :],
                                  preferred_element_type=jnp.float32)
            o_ref[pl.ds(base, mc), :] = (jnp.maximum(za + b2_ref[0:1, :], 0.0)
                                         + jnp.maximum(zb + b2_ref[1:2, :], 0.0))


# ----------------------------- parameter folding -----------------------------

def fold_bn(conv_bias, bn_params):
    gamma, beta, mean, var = bn_params
    scale = gamma / jnp.sqrt(var + EPS)
    bias = beta - mean * scale + conv_bias * scale
    return scale, bias


# ----------------------------- wrapper ---------------------------------------

@functools.partial(jax.jit, static_argnames=("compute_dtype",))
def adconv_forward(x_nchw, params, compute_dtype=jnp.bfloat16):
    n, cin, h, w = x_nchw.shape
    cout = params["w0"].shape[0]
    cout_p = _round_up(cout, LANE)
    packed2 = 9 * cout <= cout_p            # small-Cout: pack all 9 y-taps into one K
    k1 = 9 * cin + 1                        # 3x3xCin patch + constant-1 bias lane
    k1p = _round_up(k1, LANE)
    wp8 = _round_up(w + 2, 8)               # padded row width, sublane aligned
    hw2 = h * wp8
    ybuf_len = (h + 3) * wp8                # top halo + bottom halo + tap-overrun margin

    # ---- stage-1 im2col on the XLA side (zero rows double as pad columns) ----
    # TODO(synk): for 9*Cin >> 128 a shifted-window x layout uses ~9x less HBM than this.
    x_nhwc = jnp.transpose(x_nchw, (0, 2, 3, 1)).astype(jnp.float32)
    xp = jnp.pad(x_nhwc, ((0, 0), (1, 1), (1, 1), (0, 0)))
    patches = jnp.concatenate(
        [xp[:, dh:dh + h, dw:dw + w, :] for dh in range(3) for dw in range(3)], axis=-1)
    xc = jnp.concatenate([patches, jnp.ones((n, h, w, 1), patches.dtype)], axis=-1)
    xc = jnp.pad(xc, ((0, 0), (0, 0), (1, wp8 - w - 1), (0, k1p - k1)))
    xcol = xc.reshape(n, hw2, k1p).astype(compute_dtype)

    # ---- weights: BN scale (and conv bias) folded in f32, THEN cast to bf16 ----
    s0, b0 = fold_bn(params["b0"], params["bn0"])
    sa, ba = fold_bn(params["ba"], params["bna"])
    sb, bb = fold_bn(params["bb"], params["bnb"])

    w0_rows = jnp.transpose(params["w0"], (2, 3, 1, 0)).reshape(9 * cin, cout) * s0[None, :]
    w1 = jnp.concatenate([w0_rows, b0[None, :]], axis=0)              # (9*cin+1, cout)
    nrep = 9 if packed2 else 1                                        # lane-replicate y
    w1 = jnp.tile(w1[:, None, :], (1, nrep, 1)).reshape(k1, nrep * cout)
    w1 = jnp.pad(w1, ((0, k1p - k1), (0, cout_p - nrep * cout))).astype(compute_dtype)

    wa_t = jnp.transpose(params["wa"][:, :, 0, :], (2, 1, 0)) * sa[None, None, :]  # (3,I,O)
    wb_t = jnp.transpose(params["wb"][:, :, :, 0], (2, 1, 0)) * sb[None, None, :]  # (3,I,O)
    if packed2:
        zt = jnp.zeros((cout, cout), jnp.float32)
        a_taps = [zt, zt, zt, wa_t[0], wa_t[1], wa_t[2], zt, zt, zt]   # taps (1, dw)
        b_taps = [zt, wb_t[0], zt, zt, wb_t[1], zt, zt, wb_t[2], zt]   # taps (dh, 1)
        pad2 = ((0, cout_p - 9 * cout), (0, cout_p - cout))
        w2 = jnp.concatenate([jnp.pad(jnp.concatenate(a_taps, axis=0), pad2),
                              jnp.pad(jnp.concatenate(b_taps, axis=0), pad2)],
                             axis=1).astype(compute_dtype)             # (cout_p, 2*cout_p)
        b2 = jnp.concatenate([jnp.pad(ba, (0, cout_p - cout)),
                              jnp.pad(bb, (0, cout_p - cout))])[None, :].astype(jnp.float32)
    else:
        padt = ((0, cout_p - cout), (0, cout_p - cout))
        w2 = jnp.concatenate([jnp.pad(wa_t[d], padt) for d in range(3)]
                             + [jnp.pad(wb_t[d], padt) for d in range(3)],
                             axis=0).astype(compute_dtype)             # (6*cout_p, cout_p)
        b2 = jnp.stack([jnp.pad(ba, (0, cout_p - cout)),
                        jnp.pad(bb, (0, cout_p - cout))]).astype(jnp.float32)

    rows_per_chunk = max(1, 256 // wp8)     # ~256-sublane M chunks for stage 2

    kern = functools.partial(_adconv_kernel, h=h, wp8=wp8, cout=cout, cout_p=cout_p,
                             packed2=packed2, rows_per_chunk=rows_per_chunk)

    def const_spec(shape):                  # constant operands: single-buffered in VMEM
        return pl.BlockSpec(shape, lambda i: (0, 0), pipeline_mode=pl.Buffered(1))

    out = pl.pallas_call(
        kern,
        out_shape=jax.ShapeDtypeStruct((n, hw2, cout_p), jnp.float32),
        grid=(n,),
        in_specs=[
            pl.BlockSpec((None, hw2, k1p), lambda i: (i, 0, 0)),
            const_spec((k1p, cout_p)),
            const_spec(w2.shape),
            const_spec(b2.shape),
        ],
        out_specs=pl.BlockSpec((None, hw2, cout_p), lambda i: (i, 0, 0)),
        scratch_shapes=[pltpu.VMEM((ybuf_len, cout_p), jnp.float32)],
        compiler_params=pltpu.CompilerParams(
            dimension_semantics=("parallel",),      # shard batch across v7x cores
            # 32 MiB fits every generation's scoped default; raise to 64-96 MiB on
            # v5e/v6e (128 MiB physical) once H*W/channels grow; keep <=~48 MiB on v7x.
            vmem_limit_bytes=32 * 1024 * 1024,
        ),
    )(xcol, w1, w2, b2)

    # Drop the pad columns and lane-padding channels; back to NCHW.
    # TODO(synk): an (h, w, cout_p) out block storing only valid columns in-kernel would
    # also trim the pad-column writeback and this XLA epilogue copy.
    out = out.reshape(n, h, wp8, cout_p)[:, :, :w, :cout]
    return jnp.transpose(out, (0, 3, 1, 2))


# ----------------------------- parameters ------------------------------------

def init_params(key, in_ch, out_ch):
    ks = jax.random.split(key, 9)

    def conv_w(k, co, ci, kh, kw):
        return 0.2 * jax.random.normal(k, (co, ci, kh, kw), jnp.float32)  # OIHW

    def conv_b(k, co):
        return 0.1 * jax.random.normal(k, (co,), jnp.float32)

    def bn(k, co):
        k1, k2, k3, k4 = jax.random.split(k, 4)
        gamma = 1.0 + 0.1 * jax.random.normal(k1, (co,), jnp.float32)
        beta = 0.1 * jax.random.normal(k2, (co,), jnp.float32)
        mean = 0.1 * jax.random.normal(k3, (co,), jnp.float32)
        var = 0.5 + 0.5 * jax.random.uniform(k4, (co,), jnp.float32)
        return gamma, beta, mean, var

    return {
        "w0": conv_w(ks[0], out_ch, in_ch, 3, 3), "b0": conv_b(ks[1], out_ch), "bn0": bn(ks[2], out_ch),
        "wa": conv_w(ks[3], out_ch, out_ch, 1, 3), "ba": conv_b(ks[4], out_ch), "bna": bn(ks[5], out_ch),
        "wb": conv_w(ks[6], out_ch, out_ch, 3, 1), "bb": conv_b(ks[7], out_ch), "bnb": bn(ks[8], out_ch),
    }


# ----------------------------- reference -------------------------------------

def adconv_reference(x_nchw, params):
    def conv(x, wgt, b, pad):
        out = lax.conv_general_dilated(
            x, wgt, (1, 1), ((pad[0], pad[0]), (pad[1], pad[1])),
            dimension_numbers=("NCHW", "OIHW", "NCHW"))
        return out + b[None, :, None, None]

    def bn(x, p):
        gamma, beta, mean, var = p
        inv = gamma / jnp.sqrt(var + EPS)
        return (x - mean[None, :, None, None]) * inv[None, :, None, None] + beta[None, :, None, None]

    relu = lambda v: jnp.maximum(v, 0.0)
    y = relu(bn(conv(x_nchw, params["w0"], params["b0"], (1, 1)), params["bn0"]))
    x1 = relu(bn(conv(y, params["wa"], params["ba"], (0, 1)), params["bna"]))
    x2 = relu(bn(conv(y, params["wb"], params["bb"], (1, 0)), params["bnb"]))
    return x1 + x2


if __name__ == "__main__":
    key = jax.random.PRNGKey(0)
    k_x, k_p, k_x2, k_p2 = jax.random.split(key, 4)

    # --- main config (packed small-channel path): N=2, Cin=4, Cout=8, 16x16 ---
    N, Cin, Cout, H, W = 2, 4, 8, 16, 16
    x = jax.random.normal(k_x, (N, Cin, H, W), jnp.float32)
    params = init_params(k_p, Cin, Cout)
    ref = adconv_reference(x, params)

    # f32 compute: tight numerical check of the kernel logic.
    out_f32 = jax.block_until_ready(adconv_forward(x, params, compute_dtype=jnp.float32))
    assert out_f32.shape == (N, Cout, H, W), out_f32.shape
    assert jnp.allclose(out_f32, ref, rtol=1e-4, atol=5e-4), float(jnp.max(jnp.abs(out_f32 - ref)))

    # bf16 default (perf configuration): relative-Frobenius error vs f32 reference.
    out_bf16 = jax.block_until_ready(adconv_forward(x, params))
    assert out_bf16.shape == (N, Cout, H, W), out_bf16.shape
    rel = float(jnp.sqrt(jnp.sum((out_bf16 - ref) ** 2) / jnp.sum(ref ** 2)))
    assert rel < 3e-2, rel

    # --- large-Cout fallback path (9*Cout > 128 -> shifted-window stage 2) ---
    x2 = jax.random.normal(k_x2, (1, 4, 8, 8), jnp.float32)
    params2 = init_params(k_p2, 4, 32)
    out2 = jax.block_until_ready(adconv_forward(x2, params2, compute_dtype=jnp.float32))
    ref2 = adconv_reference(x2, params2)
    assert out2.shape == (1, 32, 8, 8), out2.shape
    assert jnp.allclose(out2, ref2, rtol=1e-4, atol=2e-3), float(jnp.max(jnp.abs(out2 - ref2)))

    print("KERNEL_OK")
</pallas_src>

<mosaic_0001>
module attributes {stable_mosaic.version = 11 : i64} {
  func.func @_adconv_kernel(%arg0: i32, %arg1: memref<1x384x128xf32, #tpu.memory_space<vmem>>, %arg2: memref<128x128xf32, #tpu.memory_space<vmem>>, %arg3: memref<128x256xf32, #tpu.memory_space<vmem>>, %arg4: memref<1x256xf32, #tpu.memory_space<vmem>>, %arg5: memref<1x384x128xf32, #tpu.memory_space<vmem>>, %arg6: memref<456x128xf32, #tpu.memory_space<vmem>>) attributes {dimension_semantics = [#tpu.dimension_semantics<parallel>], iteration_bounds = array<i64: 2>, scalar_prefetch = 0 : i64, scratch_operands = 1 : i64, tpu.core_type = #tpu.core_type<tc>, window_params = [{transform_indices = @transform_0, window_bounds = array<i64: 1, 384, 128>}, {pipeline_mode = #tpu.pipeline_mode<synchronous>, transform_indices = @transform_1, window_bounds = array<i64: 128, 128>}, {pipeline_mode = #tpu.pipeline_mode<synchronous>, transform_indices = @transform_2, window_bounds = array<i64: 128, 256>}, {pipeline_mode = #tpu.pipeline_mode<synchronous>, transform_indices = @transform_3, window_bounds = array<i64: 1, 256>}, {transform_indices = @transform_4, window_bounds = array<i64: 1, 384, 128>}]} {
    %c0 = arith.constant 0 : index
    %c0_0 = arith.constant 0 : index
    %c0_1 = arith.constant 0 : index
    %0 = vector.load %arg1[%c0, %c0_0, %c0_1] : memref<1x384x128xf32, #tpu.memory_space<vmem>>, vector<1x384x128xf32>
    %1 = vector.shape_cast %0 : vector<1x384x128xf32> to vector<384x128xf32>
    %c0_2 = arith.constant 0 : index
    %c0_3 = arith.constant 0 : index
    %2 = vector.load %arg2[%c0_2, %c0_3] : memref<128x128xf32, #tpu.memory_space<vmem>>, vector<128x128xf32>
    %cst = arith.constant dense<0.000000e+00> : vector<384x128xf32>
    %3 = tpu.matmul %1, %2, %cst {dimension_numbers = #tpu.dot_dimension_numbers<[1], [0], [0], [1], [0, 0, 1, 1], [], []>} : vector<384x128xf32>, vector<128x128xf32>, vector<384x128xf32> -> vector<384x128xf32>
    %cst_4 = arith.constant 0.000000e+00 : f32
    %4 = vector.broadcast %cst_4 : f32 to vector<384x128xf32>
    %5 = arith.maximumf %3, %4 : vector<384x128xf32>
    %cst_5 = arith.constant 0.000000e+00 : f32
    %6 = vector.broadcast %cst_5 : f32 to vector<24x128xf32>
    %c0_6 = arith.constant 0 : index
    %c0_7 = arith.constant 0 : index
    %7 = vector.load %arg6[%c0_6, %c0_7] : memref<456x128xf32, #tpu.memory_space<vmem>>, vector<24x128xf32>
    tpu.vector_store %arg6[%c0_6, %c0_7], %6 {strides = array<i32>} : memref<456x128xf32, #tpu.memory_space<vmem>>, vector<24x128xf32>,
    %cst_8 = arith.constant 0.000000e+00 : f32
    %8 = vector.broadcast %cst_8 : f32 to vector<48x128xf32>
    %c408 = arith.constant 408 : index
    %c0_9 = arith.constant 0 : index
    %9 = vector.load %arg6[%c408, %c0_9] : memref<456x128xf32, #tpu.memory_space<vmem>>, vector<48x128xf32>
    tpu.vector_store %arg6[%c408, %c0_9], %8 {strides = array<i32>} : memref<456x128xf32, #tpu.memory_space<vmem>>, vector<48x128xf32>,
    %c24 = arith.constant 24 : index
    %c0_10 = arith.constant 0 : index
    %10 = vector.load %arg6[%c24, %c0_10] : memref<456x128xf32, #tpu.memory_space<vmem>>, vector<384x128xf32>
    tpu.vector_store %arg6[%c24, %c0_10], %5 {strides = array<i32>} : memref<456x128xf32, #tpu.memory_space<vmem>>, vector<384x128xf32>,
    %11 = tpu.iota {dimensions = array<i32: 1>} : vector<1x128xi32>
    %cst_11 = arith.constant 0.000000e+00 : f32
    %12 = vector.broadcast %cst_11 : f32 to vector<240x128xf32>
    %c0_12 = arith.constant 0 : index
    %c0_13 = arith.constant 0 : index
    %13 = vector.load %arg6[%c0_12, %c0_13] : memref<456x128xf32, #tpu.memory_space<vmem>>, vector<240x128xf32>
    %c0_i32 = arith.constant 0 : i32
    %14 = vector.broadcast %c0_i32 : i32 to vector<1x128xi32>
    %15 = arith.cmpi sge, %11, %14 : vector<1x128xi32>
    %c8_i32 = arith.constant 8 : i32
    %16 = vector.broadcast %c8_i32 : i32 to vector<1x128xi32>
    %17 = arith.cmpi slt, %11, %16 : vector<1x128xi32>
    %18 = arith.andi %15, %17 : vector<1x128xi1>
    %cst_14 = arith.constant 0.000000e+00 : f32
    %19 = vector.shape_cast %18 : vector<1x128xi1> to vector<1x128xi1>
    %20 = vector.broadcast %19 : vector<1x128xi1> to vector<240x128xi1>
    %21 = vector.broadcast %cst_14 : f32 to vector<240x128xf32>
    %22 = arith.select %20, %13, %21 : vector<240x128xi1>, vector<240x128xf32>
    %23 = arith.addf %12, %22 : vector<240x128xf32>
    %c1 = arith.constant 1 : index
    %c0_15 = arith.constant 0 : index
    %24 = vector.load %arg6[%c1, %c0_15] : memref<456x128xf32, #tpu.memory_space<vmem>>, vector<240x128xf32>
    %c8_i32_16 = arith.constant 8 : i32
    %25 = vector.broadcast %c8_i32_16 : i32 to vector<1x128xi32>
    %26 = arith.cmpi sge, %11, %25 : vector<1x128xi32>
    %c16_i32 = arith.constant 16 : i32
    %27 = vector.broadcast %c16_i32 : i32 to vector<1x128xi32>
    %28 = arith.cmpi slt, %11, %27 : vector<1x128xi32>
    %29 = arith.andi %26, %28 : vector<1x128xi1>
    %cst_17 = arith.constant 0.000000e+00 : f32
    %30 = vector.shape_cast %29 : vector<1x128xi1> to vector<1x128xi1>
    %31 = vector.broadcast %30 : vector<1x128xi1> to vector<240x128xi1>
    %32 = vector.broadcast %cst_17 : f32 to vector<240x128xf32>
    %33 = arith.select %31, %24, %32 : vector<240x128xi1>, vector<240x128xf32>
    %34 = arith.addf %23, %33 : vector<240x128xf32>
    %c2 = arith.constant 2 : index
    %c0_18 = arith.constant 0 : index
    %35 = vector.load %arg6[%c2, %c0_18] : memref<456x128xf32, #tpu.memory_space<vmem>>, vector<240x128xf32>
    %c16_i32_19 = arith.constant 16 : i32
    %36 = vector.broadcast %c16_i32_19 : i32 to vector<1x128xi32>
    %37 = arith.cmpi sge, %11, %36 : vector<1x128xi32>
    %c24_i32 = arith.constant 24 : i32
    %38 = vector.broadcast %c24_i32 : i32 to vector<1x128xi32>
    %39 = arith.cmpi slt, %11, %38 : vector<1x128xi32>
    %40 = arith.andi %37, %39 : vector<1x128xi1>
    %cst_20 = arith.constant 0.000000e+00 : f32
    %41 = vector.shape_cast %40 : vector<1x128xi1> to vector<1x128xi1>
    %42 = vector.broadcast %41 : vector<1x128xi1> to vector<240x128xi1>
    %43 = vector.broadcast %cst_20 : f32 to vector<240x128xf32>
    %44 = arith.select %42, %35, %43 : vector<240x128xi1>, vector<240x128xf32>
    %45 = arith.addf %34, %44 : vector<240x128xf32>
    %c24_21 = arith.constant 24 : index
    %c0_22 = arith.constant 0 : index
    %46 = vector.load %arg6[%c24_21, %c0_22] : memref<456x128xf32, #tpu.memory_space<vmem>>, vector<240x128xf32>
    %c24_i32_23 = arith.constant 24 : i32
    %47 = vector.broadcast %c24_i32_23 : i32 to vector<1x128xi32>
    %48 = arith.cmpi sge, %11, %47 : vector<1x128xi32>
    %c32_i32 = arith.constant 32 : i32
    %49 = vector.broadcast %c32_i32 : i32 to vector<1x128xi32>
    %50 = arith.cmpi slt, %11, %49 : vector<1x128xi32>
    %51 = arith.andi %48, %50 : vector<1x128xi1>
    %cst_24 = arith.constant 0.000000e+00 : f32
    %52 = vector.shape_cast %51 : vector<1x128xi1> to vector<1x128xi1>
    %53 = vector.broadcast %52 : vector<1x128xi1> to vector<240x128xi1>
    %54 = vector.broadcast %cst_24 : f32 to vector<240x128xf32>
    %55 = arith.select %53, %46, %54 : vector<240x128xi1>, vector<240x128xf32>
    %56 = arith.addf %45, %55 : vector<240x128xf32>
    %c25 = arith.constant 25 : index
    %c0_25 = arith.constant 0 : index
    %57 = vector.load %arg6[%c25, %c0_25] : memref<456x128xf32, #tpu.memory_space<vmem>>, vector<240x128xf32>
    %c32_i32_26 = arith.constant 32 : i32
    %58 = vector.broadcast %c32_i32_26 : i32 to vector<1x128xi32>
    %59 = arith.cmpi sge, %11, %58 : vector<1x128xi32>
    %c40_i32 = arith.constant 40 : i32
    %60 = vector.broadcast %c40_i32 : i32 to vector<1x128xi32>
    %61 = arith.cmpi slt, %11, %60 : vector<1x128xi32>
    %62 = arith.andi %59, %61 : vector<1x128xi1>
    %cst_27 = arith.constant 0.000000e+00 : f32
    %63 = vector.shape_cast %62 : vector<1x128xi1> to vector<1x128xi1>
    %64 = vector.broadcast %63 : vector<1x128xi1> to vector<240x128xi1>
    %65 = vector.broadcast %cst_27 : f32 to vector<240x128xf32>
    %66 = arith.select %64, %57, %65 : vector<240x128xi1>, vector<240x128xf32>
    %67 = arith.addf %56, %66 : vector<240x128xf32>
    %c26 = arith.constant 26 : index
    %c0_28 = arith.constant 0 : index
    %68 = vector.load %arg6[%c26, %c0_28] : memref<456x128xf32, #tpu.memory_space<vmem>>, vector<240x128xf32>
    %c40_i32_29 = arith.constant 40 : i32
    %69 = vector.broadcast %c40_i32_29 : i32 to vector<1x128xi32>
    %70 = arith.cmpi sge, %11, %69 : vector<1x128xi32>
    %c48_i32 = arith.constant 48 : i32
    %71 = vector.broadcast %c48_i32 : i32 to vector<1x128xi32>
    %72 = arith.cmpi slt, %11, %71 : vector<1x128xi32>
    %73 = arith.andi %70, %72 : vector<1x128xi1>
    %cst_30 = arith.constant 0.000000e+00 : f32
    %74 = vector.shape_cast %73 : vector<1x128xi1> to vector<1x128xi1>
    %75 = vector.broadcast %74 : vector<1x128xi1> to vector<240x128xi1>
    %76 = vector.broadcast %cst_30 : f32 to vector<240x128xf32>
    %77 = arith.select %75, %68, %76 : vector<240x128xi1>, vector<240x128xf32>
    %78 = arith.addf %67, %77 : vector<240x128xf32>
    %c48 = arith.constant 48 : index
    %c0_31 = arith.constant 0 : index
    %79 = vector.load %arg6[%c48, %c0_31] : memref<456x128xf32, #tpu.memory_space<vmem>>, vector<240x128xf32>
    %c48_i32_32 = arith.constant 48 : i32
    %80 = vector.broadcast %c48_i32_32 : i32 to vector<1x128xi32>
    %81 = arith.cmpi sge, %11, %80 : vector<1x128xi32>
    %c56_i32 = arith.constant 56 : i32
    %82 = vector.broadcast %c56_i32 : i32 to vector<1x128xi32>
    %83 = arith.cmpi slt, %11, %82 : vector<1x128xi32>
    %84 = arith.andi %81, %83 : vector<1x128xi1>
    %cst_33 = arith.constant 0.000000e+00 : f32
    %85 = vector.shape_cast %84 : vector<1x128xi1> to vector<1x128xi1>
    %86 = vector.broadcast %85 : vector<1x128xi1> to vector<240x128xi1>
    %87 = vector.broadcast %cst_33 : f32 to vector<240x128xf32>
    %88 = arith.select %86, %79, %87 : vector<240x128xi1>, vector<240x128xf32>
    %89 = arith.addf %78, %88 : vector<240x128xf32>
    %c49 = arith.constant 49 : index
    %c0_34 = arith.constant 0 : index
    %90 = vector.load %arg6[%c49, %c0_34] : memref<456x128xf32, #tpu.memory_space<vmem>>, vector<240x128xf32>
    %c56_i32_35 = arith.constant 56 : i32
    %91 = vector.broadcast %c56_i32_35 : i32 to vector<1x128xi32>
    %92 = arith.cmpi sge, %11, %91 : vector<1x128xi32>
    %c64_i32 = arith.constant 64 : i32
    %93 = vector.broadcast %c64_i32 : i32 to vector<1x128xi32>
    %94 = arith.cmpi slt, %11, %93 : vector<1x128xi32>
    %95 = arith.andi %92, %94 : vector<1x128xi1>
    %cst_36 = arith.constant 0.000000e+00 : f32
    %96 = vector.shape_cast %95 : vector<1x128xi1> to vector<1x128xi1>
    %97 = vector.broadcast %96 : vector<1x128xi1> to vector<240x128xi1>
    %98 = vector.broadcast %cst_36 : f32 to vector<240x128xf32>
    %99 = arith.select %97, %90, %98 : vector<240x128xi1>, vector<240x128xf32>
    %100 = arith.addf %89, %99 : vector<240x128xf32>
    %c50 = arith.constant 50 : index
    %c0_37 = arith.constant 0 : index
    %101 = vector.load %arg6[%c50, %c0_37] : memref<456x128xf32, #tpu.memory_space<vmem>>, vector<240x128xf32>
    %c64_i32_38 = arith.constant 64 : i32
    %102 = vector.broadcast %c64_i32_38 : i32 to vector<1x128xi32>
    %103 = arith.cmpi sge, %11, %102 : vector<1x128xi32>
    %c72_i32 = arith.constant 72 : i32
    %104 = vector.broadcast %c72_i32 : i32 to vector<1x128xi32>
    %105 = arith.cmpi slt, %11, %104 : vector<1x128xi32>
    %106 = arith.andi %103, %105 : vector<1x128xi1>
    %cst_39 = arith.constant 0.000000e+00 : f32
    %107 = vector.shape_cast %106 : vector<1x128xi1> to vector<1x128xi1>
    %108 = vector.broadcast %107 : vector<1x128xi1> to vector<240x128xi1>
    %109 = vector.broadcast %cst_39 : f32 to vector<240x128xf32>
    %110 = arith.select %108, %101, %109 : vector<240x128xi1>, vector<240x128xf32>
    %111 = arith.addf %100, %110 : vector<240x128xf32>
    %c0_40 = arith.constant 0 : index
    %c0_41 = arith.constant 0 : index
    %112 = vector.load %arg3[%c0_40, %c0_41] : memref<128x256xf32, #tpu.memory_space<vmem>>, vector<128x256xf32>
    %cst_42 = arith.constant dense<0.000000e+00> : vector<240x256xf32>
    %113 = tpu.matmul %111, %112, %cst_42 {dimension_numbers = #tpu.dot_dimension_numbers<[1], [0], [0], [1], [0, 0, 1, 1], [], []>} : vector<240x128xf32>, vector<128x256xf32>, vector<240x256xf32> -> vector<240x256xf32>
    %c0_43 = arith.constant 0 : index
    %c0_44 = arith.constant 0 : index
    %114 = vector.load %arg4[%c0_43, %c0_44] : memref<1x256xf32, #tpu.memory_space<vmem>>, vector<1x256xf32>
    %115 = vector.broadcast %114 : vector<1x256xf32> to vector<240x256xf32>
    %116 = arith.addf %113, %115 : vector<240x256xf32>
    %117 = vector.extract_strided_slice %116 {offsets = [0, 0], sizes = [240, 128], strides = [1, 1]} : vector<240x256xf32> to vector<240x128xf32>
    %cst_45 = arith.constant 0.000000e+00 : f32
    %118 = vector.broadcast %cst_45 : f32 to vector<240x128xf32>
    %119 = arith.maximumf %117, %118 : vector<240x128xf32>
    %120 = vector.extract_strided_slice %116 {offsets = [0, 128], sizes = [240, 128], strides = [1, 1]} : vector<240x256xf32> to vector<240x128xf32>
    %cst_46 = arith.constant 0.000000e+00 : f32
    %121 = vector.broadcast %cst_46 : f32 to vector<240x128xf32>
    %122 = arith.maximumf %120, %121 : vector<240x128xf32>
    %123 = arith.addf %119, %122 : vector<240x128xf32>
    %c0_47 = arith.constant 0 : index
    %c0_48 = arith.constant 0 : index
    %c0_49 = arith.constant 0 : index
    %124 = vector.load %arg5[%c0_47, %c0_48, %c0_49] : memref<1x384x128xf32, #tpu.memory_space<vmem>>, vector<1x240x128xf32>
    %125 = vector.shape_cast %124 : vector<1x240x128xf32> to vector<240x128xf32>
    %126 = vector.shape_cast %123 : vector<240x128xf32> to vector<1x240x128xf32>
    tpu.vector_store %arg5[%c0_47, %c0_48, %c0_49], %126 {strides = array<i32>} : memref<1x384x128xf32, #tpu.memory_space<vmem>>, vector<1x240x128xf32>,
    %cst_50 = arith.constant 0.000000e+00 : f32
    %127 = vector.broadcast %cst_50 : f32 to vector<144x128xf32>
    %c240 = arith.constant 240 : index
    %c0_51 = arith.constant 0 : index
    %128 = vector.load %arg6[%c240, %c0_51] : memref<456x128xf32, #tpu.memory_space<vmem>>, vector<144x128xf32>
    %c0_i32_52 = arith.constant 0 : i32
    %129 = vector.broadcast %c0_i32_52 : i32 to vector<1x128xi32>
    %130 = arith.cmpi sge, %11, %129 : vector<1x128xi32>
    %c8_i32_53 = arith.constant 8 : i32
    %131 = vector.broadcast %c8_i32_53 : i32 to vector<1x128xi32>
    %132 = arith.cmpi slt, %11, %131 : vector<1x128xi32>
    %133 = arith.andi %130, %132 : vector<1x128xi1>
    %cst_54 = arith.constant 0.000000e+00 : f32
    %134 = vector.shape_cast %133 : vector<1x128xi1> to vector<1x128xi1>
    %135 = vector.broadcast %134 : vector<1x128xi1> to vector<144x128xi1>
    %136 = vector.broadcast %cst_54 : f32 to vector<144x128xf32>
    %137 = arith.select %135, %128, %136 : vector<144x128xi1>, vector<144x128xf32>
    %138 = arith.addf %127, %137 : vector<144x128xf32>
    %c241 = arith.constant 241 : index
    %c0_55 = arith.constant 0 : index
    %139 = vector.load %arg6[%c241, %c0_55] : memref<456x128xf32, #tpu.memory_space<vmem>>, vector<144x128xf32>
    %c8_i32_56 = arith.constant 8 : i32
    %140 = vector.broadcast %c8_i32_56 : i32 to vector<1x128xi32>
    %141 = arith.cmpi sge, %11, %140 : vector<1x128xi32>
    %c16_i32_57 = arith.constant 16 : i32
    %142 = vector.broadcast %c16_i32_57 : i32 to vector<1x128xi32>
    %143 = arith.cmpi slt, %11, %142 : vector<1x128xi32>
    %144 = arith.andi %141, %143 : vector<1x128xi1>
    %cst_58 = arith.constant 0.000000e+00 : f32
    %145 = vector.shape_cast %144 : vector<1x128xi1> to vector<1x128xi1>
    %146 = vector.broadcast %145 : vector<1x128xi1> to vector<144x128xi1>
    %147 = vector.broadcast %cst_58 : f32 to vector<144x128xf32>
    %148 = arith.select %146, %139, %147 : vector<144x128xi1>, vector<144x128xf32>
    %149 = arith.addf %138, %148 : vector<144x128xf32>
    %c242 = arith.constant 242 : index
    %c0_59 = arith.constant 0 : index
    %150 = vector.load %arg6[%c242, %c0_59] : memref<456x128xf32, #tpu.memory_space<vmem>>, vector<144x128xf32>
    %c16_i32_60 = arith.constant 16 : i32
    %151 = vector.broadcast %c16_i32_60 : i32 to vector<1x128xi32>
    %152 = arith.cmpi sge, %11, %151 : vector<1x128xi32>
    %c24_i32_61 = arith.constant 24 : i32
    %153 = vector.broadcast %c24_i32_61 : i32 to vector<1x128xi32>
    %154 = arith.cmpi slt, %11, %153 : vector<1x128xi32>
    %155 = arith.andi %152, %154 : vector<1x128xi1>
    %cst_62 = arith.constant 0.000000e+00 : f32
    %156 = vector.shape_cast %155 : vector<1x128xi1> to vector<1x128xi1>
    %157 = vector.broadcast %156 : vector<1x128xi1> to vector<144x128xi1>
    %158 = vector.broadcast %cst_62 : f32 to vector<144x128xf32>
    %159 = arith.select %157, %150, %158 : vector<144x128xi1>, vector<144x128xf32>
    %160 = arith.addf %149, %159 : vector<144x128xf32>
    %c264 = arith.constant 264 : index
    %c0_63 = arith.constant 0 : index
    %161 = vector.load %arg6[%c264, %c0_63] : memref<456x128xf32, #tpu.memory_space<vmem>>, vector<144x128xf32>
    %c24_i32_64 = arith.constant 24 : i32
    %162 = vector.broadcast %c24_i32_64 : i32 to vector<1x128xi32>
    %163 = arith.cmpi sge, %11, %162 : vector<1x128xi32>
    %c32_i32_65 = arith.constant 32 : i32
    %164 = vector.broadcast %c32_i32_65 : i32 to vector<1x128xi32>
    %165 = arith.cmpi slt, %11, %164 : vector<1x128xi32>
    %166 = arith.andi %163, %165 : vector<1x128xi1>
    %cst_66 = arith.constant 0.000000e+00 : f32
    %167 = vector.shape_cast %166 : vector<1x128xi1> to vector<1x128xi1>
    %168 = vector.broadcast %167 : vector<1x128xi1> to vector<144x128xi1>
    %169 = vector.broadcast %cst_66 : f32 to vector<144x128xf32>
    %170 = arith.select %168, %161, %169 : vector<144x128xi1>, vector<144x128xf32>
    %171 = arith.addf %160, %170 : vector<144x128xf32>
    %c265 = arith.constant 265 : index
    %c0_67 = arith.constant 0 : index
    %172 = vector.load %arg6[%c265, %c0_67] : memref<456x128xf32, #tpu.memory_space<vmem>>, vector<144x128xf32>
    %c32_i32_68 = arith.constant 32 : i32
    %173 = vector.broadcast %c32_i32_68 : i32 to vector<1x128xi32>
    %174 = arith.cmpi sge, %11, %173 : vector<1x128xi32>
    %c40_i32_69 = arith.constant 40 : i32
    %175 = vector.broadcast %c40_i32_69 : i32 to vector<1x128xi32>
    %176 = arith.cmpi slt, %11, %175 : vector<1x128xi32>
    %177 = arith.andi %174, %176 : vector<1x128xi1>
    %cst_70 = arith.constant 0.000000e+00 : f32
    %178 = vector.shape_cast %177 : vector<1x128xi1> to vector<1x128xi1>
    %179 = vector.broadcast %178 : vector<1x128xi1> to vector<144x128xi1>
    %180 = vector.broadcast %cst_70 : f32 to vector<144x128xf32>
    %181 = arith.select %179, %172, %180 : vector<144x128xi1>, vector<144x128xf32>
    %182 = arith.addf %171, %181 : vector<144x128xf32>
    %c266 = arith.constant 266 : index
    %c0_71 = arith.constant 0 : index
    %183 = vector.load %arg6[%c266, %c0_71] : memref<456x128xf32, #tpu.memory_space<vmem>>, vector<144x128xf32>
    %c40_i32_72 = arith.constant 40 : i32
    %184 = vector.broadcast %c40_i32_72 : i32 to vector<1x128xi32>
    %185 = arith.cmpi sge, %11, %184 : vector<1x128xi32>
    %c48_i32_73 = arith.constant 48 : i32
    %186 = vector.broadcast %c48_i32_73 : i32 to vector<1x128xi32>
    %187 = arith.cmpi slt, %11, %186 : vector<1x128xi32>
    %188 = arith.andi %185, %187 : vector<1x128xi1>
    %cst_74 = arith.constant 0.000000e+00 : f32
    %189 = vector.shape_cast %188 : vector<1x128xi1> to vector<1x128xi1>
    %190 = vector.broadcast %189 : vector<1x128xi1> to vector<144x128xi1>
    %191 = vector.broadcast %cst_74 : f32 to vector<144x128xf32>
    %192 = arith.select %190, %183, %191 : vector<144x128xi1>, vector<144x128xf32>
    %193 = arith.addf %182, %192 : vector<144x128xf32>
    %c288 = arith.constant 288 : index
    %c0_75 = arith.constant 0 : index
    %194 = vector.load %arg6[%c288, %c0_75] : memref<456x128xf32, #tpu.memory_space<vmem>>, vector<144x128xf32>
    %c48_i32_76 = arith.constant 48 : i32
    %195 = vector.broadcast %c48_i32_76 : i32 to vector<1x128xi32>
    %196 = arith.cmpi sge, %11, %195 : vector<1x128xi32>
    %c56_i32_77 = arith.constant 56 : i32
    %197 = vector.broadcast %c56_i32_77 : i32 to vector<1x128xi32>
    %198 = arith.cmpi slt, %11, %197 : vector<1x128xi32>
    %199 = arith.andi %196, %198 : vector<1x128xi1>
    %cst_78 = arith.constant 0.000000e+00 : f32
    %200 = vector.shape_cast %199 : vector<1x128xi1> to vector<1x128xi1>
    %201 = vector.broadcast %200 : vector<1x128xi1> to vector<144x128xi1>
    %202 = vector.broadcast %cst_78 : f32 to vector<144x128xf32>
    %203 = arith.select %201, %194, %202 : vector<144x128xi1>, vector<144x128xf32>
    %204 = arith.addf %193, %203 : vector<144x128xf32>
    %c289 = arith.constant 289 : index
    %c0_79 = arith.constant 0 : index
    %205 = vector.load %arg6[%c289, %c0_79] : memref<456x128xf32, #tpu.memory_space<vmem>>, vector<144x128xf32>
    %c56_i32_80 = arith.constant 56 : i32
    %206 = vector.broadcast %c56_i32_80 : i32 to vector<1x128xi32>
    %207 = arith.cmpi sge, %11, %206 : vector<1x128xi32>
    %c64_i32_81 = arith.constant 64 : i32
    %208 = vector.broadcast %c64_i32_81 : i32 to vector<1x128xi32>
    %209 = arith.cmpi slt, %11, %208 : vector<1x128xi32>
    %210 = arith.andi %207, %209 : vector<1x128xi1>
    %cst_82 = arith.constant 0.000000e+00 : f32
    %211 = vector.shape_cast %210 : vector<1x128xi1> to vector<1x128xi1>
    %212 = vector.broadcast %211 : vector<1x128xi1> to vector<144x128xi1>
    %213 = vector.broadcast %cst_82 : f32 to vector<144x128xf32>
    %214 = arith.select %212, %205, %213 : vector<144x128xi1>, vector<144x128xf32>
    %215 = arith.addf %204, %214 : vector<144x128xf32>
    %c290 = arith.constant 290 : index
    %c0_83 = arith.constant 0 : index
    %216 = vector.load %arg6[%c290, %c0_83] : memref<456x128xf32, #tpu.memory_space<vmem>>, vector<144x128xf32>
    %c64_i32_84 = arith.constant 64 : i32
    %217 = vector.broadcast %c64_i32_84 : i32 to vector<1x128xi32>
    %218 = arith.cmpi sge, %11, %217 : vector<1x128xi32>
    %c72_i32_85 = arith.constant 72 : i32
    %219 = vector.broadcast %c72_i32_85 : i32 to vector<1x128xi32>
    %220 = arith.cmpi slt, %11, %219 : vector<1x128xi32>
    %221 = arith.andi %218, %220 : vector<1x128xi1>
    %cst_86 = arith.constant 0.000000e+00 : f32
    %222 = vector.shape_cast %221 : vector<1x128xi1> to vector<1x128xi1>
    %223 = vector.broadcast %222 : vector<1x128xi1> to vector<144x128xi1>
    %224 = vector.broadcast %cst_86 : f32 to vector<144x128xf32>
    %225 = arith.select %223, %216, %224 : vector<144x128xi1>, vector<144x128xf32>
    %226 = arith.addf %215, %225 : vector<144x128xf32>
    %c0_87 = arith.constant 0 : index
    %c0_88 = arith.constant 0 : index
    %227 = vector.load %arg3[%c0_87, %c0_88] : memref<128x256xf32, #tpu.memory_space<vmem>>, vector<128x256xf32>
    %cst_89 = arith.constant dense<0.000000e+00> : vector<144x256xf32>
    %228 = tpu.matmul %226, %227, %cst_89 {dimension_numbers = #tpu.dot_dimension_numbers<[1], [0], [0], [1], [0, 0, 1, 1], [], []>} : vector<144x128xf32>, vector<128x256xf32>, vector<144x256xf32> -> vector<144x256xf32>
    %c0_90 = arith.constant 0 : index
    %c0_91 = arith.constant 0 : index
    %229 = vector.load %arg4[%c0_90, %c0_91] : memref<1x256xf32, #tpu.memory_space<vmem>>, vector<1x256xf32>
    %230 = vector.broadcast %229 : vector<1x256xf32> to vector<144x256xf32>
    %231 = arith.addf %228, %230 : vector<144x256xf32>
    %232 = vector.extract_strided_slice %231 {offsets = [0, 0], sizes = [144, 128], strides = [1, 1]} : vector<144x256xf32> to vector<144x128xf32>
    %cst_92 = arith.constant 0.000000e+00 : f32
    %233 = vector.broadcast %cst_92 : f32 to vector<144x128xf32>
    %234 = arith.maximumf %232, %233 : vector<144x128xf32>
    %235 = vector.extract_strided_slice %231 {offsets = [0, 128], sizes = [144, 128], strides = [1, 1]} : vector<144x256xf32> to vector<144x128xf32>
    %cst_93 = arith.constant 0.000000e+00 : f32
    %236 = vector.broadcast %cst_93 : f32 to vector<144x128xf32>
    %237 = arith.maximumf %235, %236 : vector<144x128xf32>
    %238 = arith.addf %234, %237 : vector<144x128xf32>
    %c0_94 = arith.constant 0 : index
    %c240_95 = arith.constant 240 : index
    %c0_96 = arith.constant 0 : index
    %239 = vector.load %arg5[%c0_94, %c240_95, %c0_96] : memref<1x384x128xf32, #tpu.memory_space<vmem>>, vector<1x144x128xf32>
    %240 = vector.shape_cast %239 : vector<1x144x128xf32> to vector<144x128xf32>
    %241 = vector.shape_cast %238 : vector<144x128xf32> to vector<1x144x128xf32>
    tpu.vector_store %arg5[%c0_94, %c240_95, %c0_96], %241 {strides = array<i32>} : memref<1x384x128xf32, #tpu.memory_space<vmem>>, vector<1x144x128xf32>,
    return
  }
  func.func @transform_0(%arg0: i32) -> (i32, i32, i32) {
    %c0_i32 = arith.constant 0 : i32
    %c0_i32_0 = arith.constant 0 : i32
    %c0_i32_1 = arith.constant 0 : i32
    return %arg0, %c0_i32, %c0_i32_0 : i32, i32, i32
  }
  func.func @transform_1(%arg0: i32) -> (i32, i32) {
    %c0_i32 = arith.constant 0 : i32
    %c0_i32_0 = arith.constant 0 : i32
    %c0_i32_1 = arith.constant 0 : i32
    return %c0_i32, %c0_i32_0 : i32, i32
  }
  func.func @transform_2(%arg0: i32) -> (i32, i32) {
    %c0_i32 = arith.constant 0 : i32
    %c0_i32_0 = arith.constant 0 : i32
    %c0_i32_1 = arith.constant 0 : i32
    return %c0_i32, %c0_i32_0 : i32, i32
  }
  func.func @transform_3(%arg0: i32) -> (i32, i32) {
    %c0_i32 = arith.constant 0 : i32
    %c0_i32_0 = arith.constant 0 : i32
    %c0_i32_1 = arith.constant 0 : i32
    return %c0_i32, %c0_i32_0 : i32, i32
  }
  func.func @transform_4(%arg0: i32) -> (i32, i32, i32) {
    %c0_i32 = arith.constant 0 : i32
    %c0_i32_0 = arith.constant 0 : i32
    %c0_i32_1 = arith.constant 0 : i32
    return %arg0, %c0_i32, %c0_i32_0 : i32, i32, i32
  }
}

</mosaic_0001>

<llo_original>
// kernel: adconv_forward.1
$region0: #{adconv_forward.1}
  #allocation0 [shape = 'u32[]', space=smem, size = 0x4, offset = 0x4, fixed_abs, tag = 'smem constant byte address 0x4 - core index']
  #allocation1 [shape = 'u32[72,128]{1,0:T(1,128)}', space=vmem, size = 0x9000, scoped, tag = 'internal scratch']
  #allocation2 [shape = 'f32[456,128]{1,0:T(8,128)}', space=vmem, size = 0x39000, scoped, tag = 'scratch operand']
  %s0 = inlined_call_operand.vmem [shape: f32[2,384,128], index: 0, kind: input, shape index: {}]
  %s1 = inlined_call_operand.vmem [shape: f32[128,128], index: 1, kind: input, shape index: {}]
  %s2 = inlined_call_operand.vmem [shape: f32[128,256], index: 2, kind: input, shape index: {}]
  %s3 = inlined_call_operand.vmem [shape: f32[1,256], index: 3, kind: input, shape index: {}]
  %s4 = inlined_call_operand.vmem [shape: f32[2,384,128], index: 4, kind: output, shape index: {}]
  %s5 = sld [smem:[#allocation0]]
  $region49: #{adconv_forward.1} parent=0
    _
  %s7 = ssub.s32 1, %s5
  %s8 = scalar_select 0, %s7, %s5
  loop: start=0, step=1, limit=4
  $region2: #{adconv_forward.1} parent=0 // loop_pre_header
    _
  $region3: #{adconv_forward.1} parent=0 // loop_header
    %s10 = sphi 0, %s14
    %p11 = scmp.ge.s32.totalorder %s10, 4
    %s20 = sphi 0, %s22
    %s23 = sphi 0, %s20
    %s24 = sphi 0, %s23
    %s40 = sphi 0, %s24
    %s44 = sphi 0, %s44
    %s46 = sphi 0, %s44
    %s47 = sphi 0, %s46
    %s61 = sphi 0, %s47
    %s65 = sphi 0, %s65
    %s67 = sphi 0, %s65
    %s68 = sphi 0, %s67
    %s82 = sphi 0, %s68
    %s86 = sphi 0, %s86
    %s88 = sphi 0, %s86
    %s89 = sphi 0, %s88
    %s103 = sphi 0, %s89
    %s109 = sphi 0, %s111
    %s112 = sphi 0, %s109
    %s113 = sphi 0, %s112
    %s129 = sphi 0, %s113
  $region4: #{adconv_forward.1} parent=0 // loop_header_branch
    %13 = sbr.rel (%p11) target = $region8
  $region5: #{adconv_forward.1} parent=0 // loop_body
    %s15 = ssub.s32 %s10, 1
    %s16 = ssub.s32 %s10, 2
    %s17 = sadd.s32 %s10, 1
    %s18 = ssub.s32 %s10, %s17
    %p19 = scmp.eq.s32.totalorder %s18, 0
    %s21 = sadd.s32 %s20, 1
    %s22 = scalar_select %p19, %s20, %s21
    %p25 = pneg %p19
    %p26 = scmp.eq.s32.totalorder %s10, 1
    %p27 = por %p25, %p26
    %p28 = scmp.ne.s32.totalorder %s20, %s23
    %p29 = scmp.eq.s32.totalorder %s10, 0
    %p30 = por %p28, %p29
    %p31 = scmp.ne.s32.totalorder %s20, %s23
    %p32 = scmp.eq.s32.totalorder %s15, 1
    %p33 = por %p31, %p32
    %p34 = scmp.ne.s32.totalorder %s23, %s24
    %p35 = scmp.eq.s32.totalorder %s15, 0
    %p36 = por %p34, %p35
    %p37 = scmp.ne.s32.totalorder %s23, %s24
    %p38 = scmp.eq.s32.totalorder %s16, 1
    %p39 = por %p37, %p38
    %p41 = scmp.ne.s32.totalorder %s24, %s40
    %p42 = scmp.eq.s32.totalorder %s16, 0
    %p43 = por %p41, %p42
    %s45 = sadd.s32 %s44, 1
    %p48 = scmp.eq.s32.totalorder %s10, 1
    %p49 = scmp.ne.s32.totalorder %s44, %s46
    %p50 = scmp.eq.s32.totalorder %s10, 0
    %p51 = por %p49, %p50
    %p52 = scmp.ne.s32.totalorder %s44, %s46
    %p53 = scmp.eq.s32.totalorder %s15, 1
    %p54 = por %p52, %p53
    %p55 = scmp.ne.s32.totalorder %s46, %s47
    %p56 = scmp.eq.s32.totalorder %s15, 0
    %p57 = por %p55, %p56
    %p58 = scmp.ne.s32.totalorder %s46, %s47
    %p59 = scmp.eq.s32.totalorder %s16, 1
    %p60 = por %p58, %p59
    %p62 = scmp.ne.s32.totalorder %s47, %s61
    %p63 = scmp.eq.s32.totalorder %s16, 0
    %p64 = por %p62, %p63
    %s66 = sadd.s32 %s65, 1
    %p69 = scmp.eq.s32.totalorder %s10, 1
    %p70 = scmp.ne.s32.totalorder %s65, %s67
    %p71 = scmp.eq.s32.totalorder %s10, 0
    %p72 = por %p70, %p71
    %p73 = scmp.ne.s32.totalorder %s65, %s67
    %p74 = scmp.eq.s32.totalorder %s15, 1
    %p75 = por %p73, %p74
    %p76 = scmp.ne.s32.totalorder %s67, %s68
    %p77 = scmp.eq.s32.totalorder %s15, 0
    %p78 = por %p76, %p77
    %p79 = scmp.ne.s32.totalorder %s67, %s68
    %p80 = scmp.eq.s32.totalorder %s16, 1
    %p81 = por %p79, %p80
    %p83 = scmp.ne.s32.totalorder %s68, %s82
    %p84 = scmp.eq.s32.totalorder %s16, 0
    %p85 = por %p83, %p84
    %s87 = sadd.s32 %s86, 1
    %p90 = scmp.eq.s32.totalorder %s10, 1
    %p91 = scmp.ne.s32.totalorder %s86, %s88
    %p92 = scmp.eq.s32.totalorder %s10, 0
    %p93 = por %p91, %p92
    %p94 = scmp.ne.s32.totalorder %s86, %s88
    %p95 = scmp.eq.s32.totalorder %s15, 1
    %p96 = por %p94, %p95
    %p97 = scmp.ne.s32.totalorder %s88, %s89
    %p98 = scmp.eq.s32.totalorder %s15, 0
    %p99 = por %p97, %p98
    %p100 = scmp.ne.s32.totalorder %s88, %s89
    %p101 = scmp.eq.s32.totalorder %s16, 1
    %p102 = por %p100, %p101
    %p104 = scmp.ne.s32.totalorder %s89, %s103
    %p105 = scmp.eq.s32.totalorder %s16, 0
    %p106 = por %p104, %p105
    %s107 = ssub.s32 %s10, %s17
    %p108 = scmp.eq.s32.totalorder %s107, 0
    %s110 = sadd.s32 %s109, 1
    %s111 = scalar_select %p108, %s109, %s110
    %p114 = pneg %p108
    %p115 = scmp.eq.s32.totalorder %s10, 1
    %p116 = por %p114, %p115
    %p117 = scmp.ne.s32.totalorder %s109, %s112
    %p118 = scmp.eq.s32.totalorder %s10, 0
    %p119 = por %p117, %p118
    %p120 = scmp.ne.s32.totalorder %s109, %s112
    %p121 = scmp.eq.s32.totalorder %s15, 1
    %p122 = por %p120, %p121
    %p123 = scmp.ne.s32.totalorder %s112, %s113
    %p124 = scmp.eq.s32.totalorder %s15, 0
    %p125 = por %p123, %p124
    %p126 = scmp.ne.s32.totalorder %s112, %s113
    %p127 = scmp.eq.s32.totalorder %s16, 1
    %p128 = por %p126, %p127
    %p130 = scmp.ne.s32.totalorder %s113, %s129
    %p131 = scmp.eq.s32.totalorder %s16, 0
    %p132 = por %p130, %p131
    %p133 = scmp.le.s32.totalorder 1, %s10
    %p134 = scmp.lt.s32.totalorder %s10, 3
    %p135 = pnand %p133, %p134
    %p136 = pneg %p135
    // Predicated region
    $region9: #{adconv_forward.1} parent=5 // pred_check
      _
    $region10: #{adconv_forward.1} parent=5 // pred_check_branch
      %138 = sbr.rel (%p135) target = $region12
    $region11: #{adconv_forward.1} parent=5 // pred_region
      %s139 = ssub.s32 %s10, 1
      // Predicated region
      $region13: #{adconv_forward.1} parent=11 // pred_check
        %p140 = pneg %p57
      $region14: #{adconv_forward.1} parent=11 // pred_check_branch
        %142 = sbr.rel (%p140) target = $region16
      $region15: #{adconv_forward.1} parent=11 // pred_region
        _
      $region16: #{adconv_forward.1} parent=11 // pred_fallthru
        _
      // Predicated region
      $region17: #{adconv_forward.1} parent=11 // pred_check
        %p143 = pneg %p78
      $region18: #{adconv_forward.1} parent=11 // pred_check_branch
        %145 = sbr.rel (%p143) target = $region20
      $region19: #{adconv_forward.1} parent=11 // pred_region
        _
      $region20: #{adconv_forward.1} parent=11 // pred_fallthru
        _
      // Predicated region
      $region21: #{adconv_forward.1} parent=11 // pred_check
        %p146 = pneg %p99
      $region22: #{adconv_forward.1} parent=11 // pred_check_branch
        %148 = sbr.rel (%p146) target = $region24
      $region23: #{adconv_forward.1} parent=11 // pred_region
        _
      $region24: #{adconv_forward.1} parent=11 // pred_fallthru
        _
    $region12: #{adconv_forward.1} parent=5 // pred_fallthru
      _
    %p149 = scmp.lt.s32.totalorder %s10, 2
    // Predicated region
    $region25: #{adconv_forward.1} parent=5 // pred_check
      %p150 = pneg %p149
    $region26: #{adconv_forward.1} parent=5 // pred_check_branch
      %152 = sbr.rel (%p150) target = $region28
    $region27: #{adconv_forward.1} parent=5 // pred_region
      // Predicated region
      $region29: #{adconv_forward.1} parent=27 // pred_check
        %p153 = pneg %p30
      $region30: #{adconv_forward.1} parent=27 // pred_check_branch
        %155 = sbr.rel (%p153) target = $region32
      $region31: #{adconv_forward.1} parent=27 // pred_region
        %p156 = scmp.lt.s32.totalorder %s10, 1
        %s157 = scalar_select %p156, %s10, 1
        %s158 = smul.addr %s157, 48
        %s159 = smul.addr %s158, 8
        %s160 = scalar_lea.vmem %s0, %s159
      $region32: #{adconv_forward.1} parent=27 // pred_fallthru
        _
    $region28: #{adconv_forward.1} parent=5 // pred_fallthru
      _
    %p161 = scmp.le.s32.totalorder 1, %s10
    %p162 = scmp.lt.s32.totalorder %s10, 3
    %p163 = pnand %p161, %p162
    %p164 = pneg %p163
    // Predicated region
    $region33: #{adconv_forward.1} parent=5 // pred_check
      _
    $region34: #{adconv_forward.1} parent=5 // pred_check_branch
      %166 = sbr.rel (%p163) target = $region36
    $region35: #{adconv_forward.1} parent=5 // pred_region
      %s167 = ssub.s32 %s10, 1
      %p168 = scmp.lt.s32.totalorder %s15, 1
      %s169 = scalar_select %p168, %s15, 1
      %s170 = smul.addr %s169, 48
      %s171 = smul.addr %s170, 8
      %s172 = scalar_lea.vmem %s0, %s171
      %p173 = pneg %p36
      %p174 = pneg %p33
      %p175 = pneg %p57
      %p176 = pneg %p54
      %p177 = pneg %p78
      %p178 = pneg %p75
      %p179 = pneg %p99
      %p180 = pneg %p96
      %p181 = pneg %p125
      %p182 = pneg %p122
      %p183 = scmp.lt.s32.totalorder %s15, 1
      %s184 = scalar_select %p183, %s15, 1
      %s185 = smul.addr %s184, 48
      %s186 = smul.addr %s185, 8
      %s187 = scalar_lea.vmem %s4, %s186
      %p188 = scmp.lt.s32.totalorder %s15, 1
      %s189 = scalar_select %p188, %s15, 1
      %s190 = smul.addr %s189, 48
      %s191 = smul.addr %s190, 8
      %s192 = scalar_lea.vmem %s0, %s191
      %p193 = scmp.lt.s32.totalorder %s15, 1
      %s194 = scalar_select %p193, %s15, 1
      %s195 = smul.addr %s194, 48
      %s196 = smul.addr %s195, 8
      %s197 = scalar_lea.vmem %s4, %s196
      %v198 = vld [vmem:[%s192] sm:$0xff]
      %v199 = vld [vmem:[%s192 + $0x8] sm:$0xff]
      %v200 = vld [vmem:[%s192 + $0x10] sm:$0xff]
      %v201 = vld [vmem:[%s192 + $0x18] sm:$0xff]
      %v202 = vld [vmem:[%s192 + $0x20] sm:$0xff]
      %v203 = vld [vmem:[%s192 + $0x28] sm:$0xff]
      %v204 = vld [vmem:[%s192 + $0x30] sm:$0xff]
      %v205 = vld [vmem:[%s192 + $0x38] sm:$0xff]
      %v206 = vld [vmem:[%s192 + $0x40] sm:$0xff]
      %v207 = vld [vmem:[%s192 + $0x48] sm:$0xff]
      %v208 = vld [vmem:[%s192 + $0x50] sm:$0xff]
      %v209 = vld [vmem:[%s192 + $0x58] sm:$0xff]
      %v210 = vld [vmem:[%s192 + $0x60] sm:$0xff]
      %v211 = vld [vmem:[%s192 + $0x68] sm:$0xff]
      %v212 = vld [vmem:[%s192 + $0x70] sm:$0xff]
      %v213 = vld [vmem:[%s192 + $0x78] sm:$0xff]
      %v214 = vld [vmem:[%s192 + $0x80] sm:$0xff]
      %v215 = vld [vmem:[%s192 + $0x88] sm:$0xff]
      %v216 = vld [vmem:[%s192 + $0x90] sm:$0xff]
      %v217 = vld [vmem:[%s192 + $0x98] sm:$0xff]
      %v218 = vld [vmem:[%s192 + $0xa0] sm:$0xff]
      %v219 = vld [vmem:[%s192 + $0xa8] sm:$0xff]
      %v220 = vld [vmem:[%s192 + $0xb0] sm:$0xff]
      %v221 = vld [vmem:[%s192 + $0xb8] sm:$0xff]
      %v222 = vld [vmem:[%s192 + $0xc0] sm:$0xff]
      %v223 = vld [vmem:[%s192 + $0xc8] sm:$0xff]
      %v224 = vld [vmem:[%s192 + $0xd0] sm:$0xff]
      %v225 = vld [vmem:[%s192 + $0xd8] sm:$0xff]
      %v226 = vld [vmem:[%s192 + $0xe0] sm:$0xff]
      %v227 = vld [vmem:[%s192 + $0xe8] sm:$0xff]
      %v228 = vld [vmem:[%s192 + $0xf0] sm:$0xff]
      %v229 = vld [vmem:[%s192 + $0xf8] sm:$0xff]
      %v230 = vld [vmem:[%s192 + $0x100] sm:$0xff]
      %v231 = vld [vmem:[%s192 + $0x108] sm:$0xff]
      %v232 = vld [vmem:[%s192 + $0x110] sm:$0xff]
      %v233 = vld [vmem:[%s192 + $0x118] sm:$0xff]
      %v234 = vld [vmem:[%s192 + $0x120] sm:$0xff]
      %v235 = vld [vmem:[%s192 + $0x128] sm:$0xff]
      %v236 = vld [vmem:[%s192 + $0x130] sm:$0xff]
      %v237 = vld [vmem:[%s192 + $0x138] sm:$0xff]
      %v238 = vld [vmem:[%s192 + $0x140] sm:$0xff]
      %v239 = vld [vmem:[%s192 + $0x148] sm:$0xff]
      %v240 = vld [vmem:[%s192 + $0x150] sm:$0xff]
      %v241 = vld [vmem:[%s192 + $0x158] sm:$0xff]
      %v242 = vld [vmem:[%s192 + $0x160] sm:$0xff]
      %v243 = vld [vmem:[%s192 + $0x168] sm:$0xff]
      %v244 = vld [vmem:[%s192 + $0x170] sm:$0xff]
      %v245 = vld [vmem:[%s192 + $0x178] sm:$0xff]
      %v246 = vld [vmem:[%s1] sm:$0xff]
      %v247 = vld [vmem:[%s1 + $0x8] sm:$0xff]
      %v248 = vld [vmem:[%s1 + $0x10] sm:$0xff]
      %v249 = vld [vmem:[%s1 + $0x18] sm:$0xff]
      %v250 = vld [vmem:[%s1 + $0x20] sm:$0xff]
      %v251 = vld [vmem:[%s1 + $0x28] sm:$0xff]
      %v252 = vld [vmem:[%s1 + $0x30] sm:$0xff]
      %v253 = vld [vmem:[%s1 + $0x38] sm:$0xff]
      %v254 = vld [vmem:[%s1 + $0x40] sm:$0xff]
      %v255 = vld [vmem:[%s1 + $0x48] sm:$0xff]
      %v256 = vld [vmem:[%s1 + $0x50] sm:$0xff]
      %v257 = vld [vmem:[%s1 + $0x58] sm:$0xff]
      %v258 = vld [vmem:[%s1 + $0x60] sm:$0xff]
      %v259 = vld [vmem:[%s1 + $0x68] sm:$0xff]
      %v260 = vld [vmem:[%s1 + $0x70] sm:$0xff]
      %v261 = vld [vmem:[%s1 + $0x78] sm:$0xff]
      %262 = vmatpush.msra.mxu0 %v261
      %263 = vmatpush.msra.mxu0 %v260
      %264 = vmatpush.msra.mxu0 %v259
      %265 = vmatpush.msra.mxu0 %v258
      %266 = vmatpush.msra.mxu0 %v257
      %267 = vmatpush.msra.mxu0 %v256
      %268 = vmatpush.msra.mxu0 %v255
      %269 = vmatpush.msra.mxu0 %v254
      %270 = vmatpush.msra.mxu0 %v253
      %271 = vmatpush.msra.mxu0 %v252
      %272 = vmatpush.msra.mxu0 %v251
      %273 = vmatpush.msra.mxu0 %v250
      %274 = vmatpush.msra.mxu0 %v249
      %275 = vmatpush.msra.mxu0 %v248
      %276 = vmatpush.msra.mxu0 %v247
      %277 = vmatpush.msra.mxu0 %v246
      %278 = vmatmul.f32.gmra.mxu0 %v198
      %v279 = vpop.f32.mrf.mxu0
      %v280 = vadd.f32 0.0, %v279
      %281 = vmatmul.f32.gmra.mxu0 %v199
      %v282 = vpop.f32.mrf.mxu0
      %v283 = vadd.f32 0.0, %v282
      %284 = vmatmul.f32.gmra.mxu0 %v200
      %v285 = vpop.f32.mrf.mxu0
      %v286 = vadd.f32 0.0, %v285
      %287 = vmatmul.f32.gmra.mxu0 %v201
      %v288 = vpop.f32.mrf.mxu0
      %v289 = vadd.f32 0.0, %v288
      %290 = vmatmul.f32.gmra.mxu0 %v202
      %v291 = vpop.f32.mrf.mxu0
      %v292 = vadd.f32 0.0, %v291
      %293 = vmatmul.f32.gmra.mxu0 %v203
      %v294 = vpop.f32.mrf.mxu0
      %v295 = vadd.f32 0.0, %v294
      %296 = vmatmul.f32.gmra.mxu0 %v204
      %v297 = vpop.f32.mrf.mxu0
      %v298 = vadd.f32 0.0, %v297
      %299 = vmatmul.f32.gmra.mxu0 %v205
      %v300 = vpop.f32.mrf.mxu0
      %v301 = vadd.f32 0.0, %v300
      %302 = vmatmul.f32.gmra.mxu0 %v206
      %v303 = vpop.f32.mrf.mxu0
      %v304 = vadd.f32 0.0, %v303
      %305 = vmatmul.f32.gmra.mxu0 %v207
      %v306 = vpop.f32.mrf.mxu0
      %v307 = vadd.f32 0.0, %v306
      %308 = vmatmul.f32.gmra.mxu0 %v208
      %v309 = vpop.f32.mrf.mxu0
      %v310 = vadd.f32 0.0, %v309
      %311 = vmatmul.f32.gmra.mxu0 %v209
      %v312 = vpop.f32.mrf.mxu0
      %v313 = vadd.f32 0.0, %v312
      %314 = vmatmul.f32.gmra.mxu0 %v210
      %v315 = vpop.f32.mrf.mxu0
      %v316 = vadd.f32 0.0, %v315
      %317 = vmatmul.f32.gmra.mxu0 %v211
      %v318 = vpop.f32.mrf.mxu0
      %v319 = vadd.f32 0.0, %v318
      %320 = vmatmul.f32.gmra.mxu0 %v212
      %v321 = vpop.f32.mrf.mxu0
      %v322 = vadd.f32 0.0, %v321
      %323 = vmatmul.f32.gmra.mxu0 %v213
      %v324 = vpop.f32.mrf.mxu0
      %v325 = vadd.f32 0.0, %v324
      %326 = vmatmul.f32.gmra.mxu0 %v214
      %v327 = vpop.f32.mrf.mxu0
      %v328 = vadd.f32 0.0, %v327
      %329 = vmatmul.f32.gmra.mxu0 %v215
      %v330 = vpop.f32.mrf.mxu0
      %v331 = vadd.f32 0.0, %v330
      %332 = vmatmul.f32.gmra.mxu0 %v216
      %v333 = vpop.f32.mrf.mxu0
      %v334 = vadd.f32 0.0, %v333
      %335 = vmatmul.f32.gmra.mxu0 %v217
      %v336 = vpop.f32.mrf.mxu0
      %v337 = vadd.f32 0.0, %v336
      %338 = vmatmul.f32.gmra.mxu0 %v218
      %v339 = vpop.f32.mrf.mxu0
      %v340 = vadd.f32 0.0, %v339
      %341 = vmatmul.f32.gmra.mxu0 %v219
      %v342 = vpop.f32.mrf.mxu0
      %v343 = vadd.f32 0.0, %v342
      %344 = vmatmul.f32.gmra.mxu0 %v220
      %v345 = vpop.f32.mrf.mxu0
      %v346 = vadd.f32 0.0, %v345
      %347 = vmatmul.f32.gmra.mxu0 %v221
      %v348 = vpop.f32.mrf.mxu0
      %v349 = vadd.f32 0.0, %v348
      %350 = vmatmul.f32.gmra.mxu0 %v222
      %v351 = vpop.f32.mrf.mxu0
      %v352 = vadd.f32 0.0, %v351
      %353 = vmatmul.f32.gmra.mxu0 %v223
      %v354 = vpop.f32.mrf.mxu0
      %v355 = vadd.f32 0.0, %v354
      %356 = vmatmul.f32.gmra.mxu0 %v224
      %v357 = vpop.f32.mrf.mxu0
      %v358 = vadd.f32 0.0, %v357
      %359 = vmatmul.f32.gmra.mxu0 %v225
      %v360 = vpop.f32.mrf.mxu0
      %v361 = vadd.f32 0.0, %v360
      %362 = vmatmul.f32.gmra.mxu0 %v226
      %v363 = vpop.f32.mrf.mxu0
      %v364 = vadd.f32 0.0, %v363
      %365 = vmatmul.f32.gmra.mxu0 %v227
      %v366 = vpop.f32.mrf.mxu0
      %v367 = vadd.f32 0.0, %v366
      %368 = vmatmul.f32.gmra.mxu0 %v228
      %v369 = vpop.f32.mrf.mxu0
      %v370 = vadd.f32 0.0, %v369
      %371 = vmatmul.f32.gmra.mxu0 %v229
      %v372 = vpop.f32.mrf.mxu0
      %v373 = vadd.f32 0.0, %v372
      %374 = vmatmul.f32.gmra.mxu0 %v230
      %v375 = vpop.f32.mrf.mxu0
      %v376 = vadd.f32 0.0, %v375
      %377 = vmatmul.f32.gmra.mxu0 %v231
      %v378 = vpop.f32.mrf.mxu0
      %v379 = vadd.f32 0.0, %v378
      %380 = vmatmul.f32.gmra.mxu0 %v232
      %v381 = vpop.f32.mrf.mxu0
      %v382 = vadd.f32 0.0, %v381
      %383 = vmatmul.f32.gmra.mxu0 %v233
      %v384 = vpop.f32.mrf.mxu0
      %v385 = vadd.f32 0.0, %v384
      %386 = vmatmul.f32.gmra.mxu0 %v234
      %v387 = vpop.f32.mrf.mxu0
      %v388 = vadd.f32 0.0, %v387
      %389 = vmatmul.f32.gmra.mxu0 %v235
      %v390 = vpop.f32.mrf.mxu0
      %v391 = vadd.f32 0.0, %v390
      %392 = vmatmul.f32.gmra.mxu0 %v236
      %v393 = vpop.f32.mrf.mxu0
      %v394 = vadd.f32 0.0, %v393
      %395 = vmatmul.f32.gmra.mxu0 %v237
      %v396 = vpop.f32.mrf.mxu0
      %v397 = vadd.f32 0.0, %v396
      %398 = vmatmul.f32.gmra.mxu0 %v238
      %v399 = vpop.f32.mrf.mxu0
      %v400 = vadd.f32 0.0, %v399
      %401 = vmatmul.f32.gmra.mxu0 %v239
      %v402 = vpop.f32.mrf.mxu0
      %v403 = vadd.f32 0.0, %v402
      %404 = vmatmul.f32.gmra.mxu0 %v240
      %v405 = vpop.f32.mrf.mxu0
      %v406 = vadd.f32 0.0, %v405
      %407 = vmatmul.f32.gmra.mxu0 %v241
      %v408 = vpop.f32.mrf.mxu0
      %v409 = vadd.f32 0.0, %v408
      %410 = vmatmul.f32.gmra.mxu0 %v242
      %v411 = vpop.f32.mrf.mxu0
      %v412 = vadd.f32 0.0, %v411
      %413 = vmatmul.f32.gmra.mxu0 %v243
      %v414 = vpop.f32.mrf.mxu0
      %v415 = vadd.f32 0.0, %v414
      %416 = vmatmul.f32.gmra.mxu0 %v244
      %v417 = vpop.f32.mrf.mxu0
      %v418 = vadd.f32 0.0, %v417
      %419 = vmatmul.f32.gmra.mxu0 %v245
      %v420 = vpop.f32.mrf.mxu0
      %v421 = vadd.f32 0.0, %v420
      %422 = vdwg.mxu0
      %v423 = vmax.f32 %v280, 0.0
      %v424 = vmax.f32 %v283, 0.0
      %v425 = vmax.f32 %v286, 0.0
      %v426 = vmax.f32 %v289, 0.0
      %v427 = vmax.f32 %v292, 0.0
      %v428 = vmax.f32 %v295, 0.0
      %v429 = vmax.f32 %v298, 0.0
      %v430 = vmax.f32 %v301, 0.0
      %v431 = vmax.f32 %v304, 0.0
      %v432 = vmax.f32 %v307, 0.0
      %v433 = vmax.f32 %v310, 0.0
      %v434 = vmax.f32 %v313, 0.0
      %v435 = vmax.f32 %v316, 0.0
      %v436 = vmax.f32 %v319, 0.0
      %v437 = vmax.f32 %v322, 0.0
      %v438 = vmax.f32 %v325, 0.0
      %v439 = vmax.f32 %v328, 0.0
      %v440 = vmax.f32 %v331, 0.0
      %v441 = vmax.f32 %v334, 0.0
      %v442 = vmax.f32 %v337, 0.0
      %v443 = vmax.f32 %v340, 0.0
      %v444 = vmax.f32 %v343, 0.0
      %v445 = vmax.f32 %v346, 0.0
      %v446 = vmax.f32 %v349, 0.0
      %v447 = vmax.f32 %v352, 0.0
      %v448 = vmax.f32 %v355, 0.0
      %v449 = vmax.f32 %v358, 0.0
      %v450 = vmax.f32 %v361, 0.0
      %v451 = vmax.f32 %v364, 0.0
      %v452 = vmax.f32 %v367, 0.0
      %v453 = vmax.f32 %v370, 0.0
      %v454 = vmax.f32 %v373, 0.0
      %v455 = vmax.f32 %v376, 0.0
      %v456 = vmax.f32 %v379, 0.0
      %v457 = vmax.f32 %v382, 0.0
      %v458 = vmax.f32 %v385, 0.0
      %v459 = vmax.f32 %v388, 0.0
      %v460 = vmax.f32 %v391, 0.0
      %v461 = vmax.f32 %v394, 0.0
      %v462 = vmax.f32 %v397, 0.0
      %v463 = vmax.f32 %v400, 0.0
      %v464 = vmax.f32 %v403, 0.0
      %v465 = vmax.f32 %v406, 0.0
      %v466 = vmax.f32 %v409, 0.0
      %v467 = vmax.f32 %v412, 0.0
      %v468 = vmax.f32 %v415, 0.0
      %v469 = vmax.f32 %v418, 0.0
      %v470 = vmax.f32 %v421, 0.0
      %471 = vst [vmem:[#allocation2] sm:$0xff] 0.0
      %472 = vst [vmem:[#allocation2 + $0x8] sm:$0xff] 0.0
      %473 = vst [vmem:[#allocation2 + $0x10] sm:$0xff] 0.0
      %474 = vst [vmem:[#allocation2 + $0x198] sm:$0xff] 0.0
      %475 = vst [vmem:[#allocation2 + $0x1a0] sm:$0xff] 0.0
      %476 = vst [vmem:[#allocation2 + $0x1a8] sm:$0xff] 0.0
      %477 = vst [vmem:[#allocation2 + $0x1b0] sm:$0xff] 0.0
      %478 = vst [vmem:[#allocation2 + $0x1b8] sm:$0xff] 0.0
      %479 = vst [vmem:[#allocation2 + $0x1c0] sm:$0xff] 0.0
      %480 = vst [vmem:[#allocation2 + $0x18] sm:$0xff] %v423
      %481 = vst [vmem:[#allocation2 + $0x20] sm:$0xff] %v424
      %482 = vst [vmem:[#allocation2 + $0x28] sm:$0xff] %v425
      %483 = vst [vmem:[#allocation2 + $0x30] sm:$0xff] %v426
      %484 = vst [vmem:[#allocation2 + $0x38] sm:$0xff] %v427
      %485 = vst [vmem:[#allocation2 + $0x40] sm:$0xff] %v428
      %486 = vst [vmem:[#allocation2 + $0x48] sm:$0xff] %v429
      %487 = vst [vmem:[#allocation2 + $0x50] sm:$0xff] %v430
      %488 = vst [vmem:[#allocation2 + $0x58] sm:$0xff] %v431
      %489 = vst [vmem:[#allocation2 + $0x60] sm:$0xff] %v432
      %490 = vst [vmem:[#allocation2 + $0x68] sm:$0xff] %v433
      %491 = vst [vmem:[#allocation2 + $0x70] sm:$0xff] %v434
      %492 = vst [vmem:[#allocation2 + $0x78] sm:$0xff] %v435
      %493 = vst [vmem:[#allocation2 + $0x80] sm:$0xff] %v436
      %494 = vst [vmem:[#allocation2 + $0x88] sm:$0xff] %v437
      %495 = vst [vmem:[#allocation2 + $0x90] sm:$0xff] %v438
      %496 = vst [vmem:[#allocation2 + $0x98] sm:$0xff] %v439
      %497 = vst [vmem:[#allocation2 + $0xa0] sm:$0xff] %v440
      %498 = vst [vmem:[#allocation2 + $0xa8] sm:$0xff] %v441
      %499 = vst [vmem:[#allocation2 + $0xb0] sm:$0xff] %v442
      %500 = vst [vmem:[#allocation2 + $0xb8] sm:$0xff] %v443
      %501 = vst [vmem:[#allocation2 + $0xc0] sm:$0xff] %v444
      %502 = vst [vmem:[#allocation2 + $0xc8] sm:$0xff] %v445
      %503 = vst [vmem:[#allocation2 + $0xd0] sm:$0xff] %v446
      %504 = vst [vmem:[#allocation2 + $0xd8] sm:$0xff] %v447
      %505 = vst [vmem:[#allocation2 + $0xe0] sm:$0xff] %v448
      %506 = vst [vmem:[#allocation2 + $0xe8] sm:$0xff] %v449
      %507 = vst [vmem:[#allocation2 + $0xf0] sm:$0xff] %v450
      %508 = vst [vmem:[#allocation2 + $0xf8] sm:$0xff] %v451
      %509 = vst [vmem:[#allocation2 + $0x100] sm:$0xff] %v452
      %510 = vst [vmem:[#allocation2 + $0x108] sm:$0xff] %v453
      %511 = vst [vmem:[#allocation2 + $0x110] sm:$0xff] %v454
      %512 = vst [vmem:[#allocation2 + $0x118] sm:$0xff] %v455
      %513 = vst [vmem:[#allocation2 + $0x120] sm:$0xff] %v456
      %514 = vst [vmem:[#allocation2 + $0x128] sm:$0xff] %v457
      %515 = vst [vmem:[#allocation2 + $0x130] sm:$0xff] %v458
      %516 = vst [vmem:[#allocation2 + $0x138] sm:$0xff] %v459
      %517 = vst [vmem:[#allocation2 + $0x140] sm:$0xff] %v460
      %518 = vst [vmem:[#allocation2 + $0x148] sm:$0xff] %v461
      %519 = vst [vmem:[#allocation2 + $0x150] sm:$0xff] %v462
      %520 = vst [vmem:[#allocation2 + $0x158] sm:$0xff] %v463
      %521 = vst [vmem:[#allocation2 + $0x160] sm:$0xff] %v464
      %522 = vst [vmem:[#allocation2 + $0x168] sm:$0xff] %v465
      %523 = vst [vmem:[#allocation2 + $0x170] sm:$0xff] %v466
      %524 = vst [vmem:[#allocation2 + $0x178] sm:$0xff] %v467
      %525 = vst [vmem:[#allocation2 + $0x180] sm:$0xff] %v468
      %526 = vst [vmem:[#allocation2 + $0x188] sm:$0xff] %v469
      %527 = vst [vmem:[#allocation2 + $0x190] sm:$0xff] %v470
      %v528 = vlaneseq
      %v529 = vand.u32 %v528, 127
      %v530 = vld [vmem:[#allocation2] sm:$0xff]
      %v531 = vld [vmem:[#allocation2 + $0x8] sm:$0xff]
      %v532 = vld [vmem:[#allocation2 + $0x10] sm:$0xff]
      %v533 = vld [vmem:[#allocation2 + $0x18] sm:$0xff]
      %v534 = vld [vmem:[#allocation2 + $0x20] sm:$0xff]
      %v535 = vld [vmem:[#allocation2 + $0x28] sm:$0xff]
      %v536 = vld [vmem:[#allocation2 + $0x30] sm:$0xff]
      %v537 = vld [vmem:[#allocation2 + $0x38] sm:$0xff]
      %v538 = vld [vmem:[#allocation2 + $0x40] sm:$0xff]
      %v539 = vld [vmem:[#allocation2 + $0x48] sm:$0xff]
      %v540 = vld [vmem:[#allocation2 + $0x50] sm:$0xff]
      %v541 = vld [vmem:[#allocation2 + $0x58] sm:$0xff]
      %v542 = vld [vmem:[#allocation2 + $0x60] sm:$0xff]
      %v543 = vld [vmem:[#allocation2 + $0x68] sm:$0xff]
      %v544 = vld [vmem:[#allocation2 + $0x70] sm:$0xff]
      %v545 = vld [vmem:[#allocation2 + $0x78] sm:$0xff]
      %v546 = vld [vmem:[#allocation2 + $0x80] sm:$0xff]
      %v547 = vld [vmem:[#allocation2 + $0x88] sm:$0xff]
      %v548 = vld [vmem:[#allocation2 + $0x90] sm:$0xff]
      %v549 = vld [vmem:[#allocation2 + $0x98] sm:$0xff]
      %v550 = vld [vmem:[#allocation2 + $0xa0] sm:$0xff]
      %v551 = vld [vmem:[#allocation2 + $0xa8] sm:$0xff]
      %v552 = vld [vmem:[#allocation2 + $0xb0] sm:$0xff]
      %v553 = vld [vmem:[#allocation2 + $0xb8] sm:$0xff]
      %v554 = vld [vmem:[#allocation2 + $0xc0] sm:$0xff]
      %v555 = vld [vmem:[#allocation2 + $0xc8] sm:$0xff]
      %v556 = vld [vmem:[#allocation2 + $0xd0] sm:$0xff]
      %v557 = vld [vmem:[#allocation2 + $0xd8] sm:$0xff]
      %v558 = vld [vmem:[#allocation2 + $0xe0] sm:$0xff]
      %v559 = vld [vmem:[#allocation2 + $0xe8] sm:$0xff]
      %vm560 = vcmp.ge.s32.totalorder %v529, 0
      %vm561 = vcmp.lt.s32.totalorder %v529, 8
      %vm562 = vmand %vm560, %vm561
      %v563 = vsel %vm562, 1, 0
      %vm564 = vcmp.eq.s32.totalorder %v563, 1
      %v565 = vsel %vm564, %v530, 0.0
      %v566 = vsel %vm564, %v531, 0.0
      %v567 = vsel %vm564, %v532, 0.0
      %v568 = vsel %vm564, %v533, 0.0
      %v569 = vsel %vm564, %v534, 0.0
      %v570 = vsel %vm564, %v535, 0.0
      %v571 = vsel %vm564, %v536, 0.0
      %v572 = vsel %vm564, %v537, 0.0
      %v573 = vsel %vm564, %v538, 0.0
      %v574 = vsel %vm564, %v539, 0.0
      %v575 = vsel %vm564, %v540, 0.0
      %v576 = vsel %vm564, %v541, 0.0
      %v577 = vsel %vm564, %v542, 0.0
      %v578 = vsel %vm564, %v543, 0.0
      %v579 = vsel %vm564, %v544, 0.0
      %v580 = vsel %vm564, %v545, 0.0
      %v581 = vsel %vm564, %v546, 0.0
      %v582 = vsel %vm564, %v547, 0.0
      %v583 = vsel %vm564, %v548, 0.0
      %v584 = vsel %vm564, %v549, 0.0
      %v585 = vsel %vm564, %v550, 0.0
      %v586 = vsel %vm564, %v551, 0.0
      %v587 = vsel %vm564, %v552, 0.0
      %v588 = vsel %vm564, %v553, 0.0
      %v589 = vsel %vm564, %v554, 0.0
      %v590 = vsel %vm564, %v555, 0.0
      %v591 = vsel %vm564, %v556, 0.0
      %v592 = vsel %vm564, %v557, 0.0
      %v593 = vsel %vm564, %v558, 0.0
      %v594 = vsel %vm564, %v559, 0.0
      %v595 = vadd.f32 %v565, 0.0
      %v596 = vadd.f32 %v566, 0.0
      %v597 = vadd.f32 %v567, 0.0
      %v598 = vadd.f32 %v568, 0.0
      %v599 = vadd.f32 %v569, 0.0
      %v600 = vadd.f32 %v570, 0.0
      %v601 = vadd.f32 %v571, 0.0
      %v602 = vadd.f32 %v572, 0.0
      %v603 = vadd.f32 %v573, 0.0
      %v604 = vadd.f32 %v574, 0.0
      %v605 = vadd.f32 %v575, 0.0
      %v606 = vadd.f32 %v576, 0.0
      %v607 = vadd.f32 %v577, 0.0
      %v608 = vadd.f32 %v578, 0.0
      %v609 = vadd.f32 %v579, 0.0
      %v610 = vadd.f32 %v580, 0.0
      %v611 = vadd.f32 %v581, 0.0
      %v612 = vadd.f32 %v582, 0.0
      %v613 = vadd.f32 %v583, 0.0
      %v614 = vadd.f32 %v584, 0.0
      %v615 = vadd.f32 %v585, 0.0
      %v616 = vadd.f32 %v586, 0.0
      %v617 = vadd.f32 %v587, 0.0
      %v618 = vadd.f32 %v588, 0.0
      %v619 = vadd.f32 %v589, 0.0
      %v620 = vadd.f32 %v590, 0.0
      %v621 = vadd.f32 %v591, 0.0
      %v622 = vadd.f32 %v592, 0.0
      %v623 = vadd.f32 %v593, 0.0
      %v624 = vadd.f32 %v594, 0.0
      %v625 = vld [vmem:[#allocation2 + $0x1] sm:$0xff]
      %v626 = vld [vmem:[#allocation2 + $0x9] sm:$0xff]
      %v627 = vld [vmem:[#allocation2 + $0x11] sm:$0xff]
      %v628 = vld [vmem:[#allocation2 + $0x19] sm:$0xff]
      %v629 = vld [vmem:[#allocation2 + $0x21] sm:$0xff]
      %v630 = vld [vmem:[#allocation2 + $0x29] sm:$0xff]
      %v631 = vld [vmem:[#allocation2 + $0x31] sm:$0xff]
      %v632 = vld [vmem:[#allocation2 + $0x39] sm:$0xff]
      %v633 = vld [vmem:[#allocation2 + $0x41] sm:$0xff]
      %v634 = vld [vmem:[#allocation2 + $0x49] sm:$0xff]
      %v635 = vld [vmem:[#allocation2 + $0x51] sm:$0xff]
      %v636 = vld [vmem:[#allocation2 + $0x59] sm:$0xff]
      %v637 = vld [vmem:[#allocation2 + $0x61] sm:$0xff]
      %v638 = vld [vmem:[#allocation2 + $0x69] sm:$0xff]
      %v639 = vld [vmem:[#allocation2 + $0x71] sm:$0xff]
      %v640 = vld [vmem:[#allocation2 + $0x79] sm:$0xff]
      %v641 = vld [vmem:[#allocation2 + $0x81] sm:$0xff]
      %v642 = vld [vmem:[#allocation2 + $0x89] sm:$0xff]
      %v643 = vld [vmem:[#allocation2 + $0x91] sm:$0xff]
      %v644 = vld [vmem:[#allocation2 + $0x99] sm:$0xff]
      %v645 = vld [vmem:[#allocation2 + $0xa1] sm:$0xff]
      %v646 = vld [vmem:[#allocation2 + $0xa9] sm:$0xff]
      %v647 = vld [vmem:[#allocation2 + $0xb1] sm:$0xff]
      %v648 = vld [vmem:[#allocation2 + $0xb9] sm:$0xff]
      %v649 = vld [vmem:[#allocation2 + $0xc1] sm:$0xff]
      %v650 = vld [vmem:[#allocation2 + $0xc9] sm:$0xff]
      %v651 = vld [vmem:[#allocation2 + $0xd1] sm:$0xff]
      %v652 = vld [vmem:[#allocation2 + $0xd9] sm:$0xff]
      %v653 = vld [vmem:[#allocation2 + $0xe1] sm:$0xff]
      %v654 = vld [vmem:[#allocation2 + $0xe9] sm:$0xff]
      %vm655 = vcmp.ge.s32.totalorder %v529, 8
      %vm656 = vcmp.lt.s32.totalorder %v529, 16
      %vm657 = vmand %vm655, %vm656
      %v658 = vsel %vm657, 1, 0
      %vm659 = vcmp.eq.s32.totalorder %v658, 1
      %v660 = vsel %vm659, %v625, 0.0
      %v661 = vsel %vm659, %v626, 0.0
      %v662 = vsel %vm659, %v627, 0.0
      %v663 = vsel %vm659, %v628, 0.0
      %v664 = vsel %vm659, %v629, 0.0
      %v665 = vsel %vm659, %v630, 0.0
      %v666 = vsel %vm659, %v631, 0.0
      %v667 = vsel %vm659, %v632, 0.0
      %v668 = vsel %vm659, %v633, 0.0
      %v669 = vsel %vm659, %v634, 0.0
      %v670 = vsel %vm659, %v635, 0.0
      %v671 = vsel %vm659, %v636, 0.0
      %v672 = vsel %vm659, %v637, 0.0
      %v673 = vsel %vm659, %v638, 0.0
      %v674 = vsel %vm659, %v639, 0.0
      %v675 = vsel %vm659, %v640, 0.0
      %v676 = vsel %vm659, %v641, 0.0
      %v677 = vsel %vm659, %v642, 0.0
      %v678 = vsel %vm659, %v643, 0.0
      %v679 = vsel %vm659, %v644, 0.0
      %v680 = vsel %vm659, %v645, 0.0
      %v681 = vsel %vm659, %v646, 0.0
      %v682 = vsel %vm659, %v647, 0.0
      %v683 = vsel %vm659, %v648, 0.0
      %v684 = vsel %vm659, %v649, 0.0
      %v685 = vsel %vm659, %v650, 0.0
      %v686 = vsel %vm659, %v651, 0.0
      %v687 = vsel %vm659, %v652, 0.0
      %v688 = vsel %vm659, %v653, 0.0
      %v689 = vsel %vm659, %v654, 0.0
      %v690 = vadd.f32 %v595, %v660
      %v691 = vadd.f32 %v596, %v661
      %v692 = vadd.f32 %v597, %v662
      %v693 = vadd.f32 %v598, %v663
      %v694 = vadd.f32 %v599, %v664
      %v695 = vadd.f32 %v600, %v665
      %v696 = vadd.f32 %v601, %v666
      %v697 = vadd.f32 %v602, %v667
      %v698 = vadd.f32 %v603, %v668
      %v699 = vadd.f32 %v604, %v669
      %v700 = vadd.f32 %v605, %v670
      %v701 = vadd.f32 %v606, %v671
      %v702 = vadd.f32 %v607, %v672
      %v703 = vadd.f32 %v608, %v673
      %v704 = vadd.f32 %v609, %v674
      %v705 = vadd.f32 %v610, %v675
      %v706 = vadd.f32 %v611, %v676
      %v707 = vadd.f32 %v612, %v677
      %v708 = vadd.f32 %v613, %v678
      %v709 = vadd.f32 %v614, %v679
      %v710 = vadd.f32 %v615, %v680
      %v711 = vadd.f32 %v616, %v681
      %v712 = vadd.f32 %v617, %v682
      %v713 = vadd.f32 %v618, %v683
      %v714 = vadd.f32 %v619, %v684
      %v715 = vadd.f32 %v620, %v685
      %v716 = vadd.f32 %v621, %v686
      %v717 = vadd.f32 %v622, %v687
      %v718 = vadd.f32 %v623, %v688
      %v719 = vadd.f32 %v624, %v689
      %v720 = vld [vmem:[#allocation2 + $0x2] sm:$0xff]
      %v721 = vld [vmem:[#allocation2 + $0xa] sm:$0xff]
      %v722 = vld [vmem:[#allocation2 + $0x12] sm:$0xff]
      %v723 = vld [vmem:[#allocation2 + $0x1a] sm:$0xff]
      %v724 = vld [vmem:[#allocation2 + $0x22] sm:$0xff]
      %v725 = vld [vmem:[#allocation2 + $0x2a] sm:$0xff]
      %v726 = vld [vmem:[#allocation2 + $0x32] sm:$0xff]
      %v727 = vld [vmem:[#allocation2 + $0x3a] sm:$0xff]
      %v728 = vld [vmem:[#allocation2 + $0x42] sm:$0xff]
      %v729 = vld [vmem:[#allocation2 + $0x4a] sm:$0xff]
      %v730 = vld [vmem:[#allocation2 + $0x52] sm:$0xff]
      %v731 = vld [vmem:[#allocation2 + $0x5a] sm:$0xff]
      %v732 = vld [vmem:[#allocation2 + $0x62] sm:$0xff]
      %v733 = vld [vmem:[#allocation2 + $0x6a] sm:$0xff]
      %v734 = vld [vmem:[#allocation2 + $0x72] sm:$0xff]
      %v735 = vld [vmem:[#allocation2 + $0x7a] sm:$0xff]
      %v736 = vld [vmem:[#allocation2 + $0x82] sm:$0xff]
      %v737 = vld [vmem:[#allocation2 + $0x8a] sm:$0xff]
      %v738 = vld [vmem:[#allocation2 + $0x92] sm:$0xff]
      %v739 = vld [vmem:[#allocation2 + $0x9a] sm:$0xff]
      %v740 = vld [vmem:[#allocation2 + $0xa2] sm:$0xff]
      %v741 = vld [vmem:[#allocation2 + $0xaa] sm:$0xff]
      %v742 = vld [vmem:[#allocation2 + $0xb2] sm:$0xff]
      %v743 = vld [vmem:[#allocation2 + $0xba] sm:$0xff]
      %v744 = vld [vmem:[#allocation2 + $0xc2] sm:$0xff]
      %v745 = vld [vmem:[#allocation2 + $0xca] sm:$0xff]
      %v746 = vld [vmem:[#allocation2 + $0xd2] sm:$0xff]
      %v747 = vld [vmem:[#allocation2 + $0xda] sm:$0xff]
      %v748 = vld [vmem:[#allocation2 + $0xe2] sm:$0xff]
      %v749 = vld [vmem:[#allocation2 + $0xea] sm:$0xff]
      %vm750 = vcmp.ge.s32.totalorder %v529, 16
      %vm751 = vcmp.lt.s32.totalorder %v529, 24
      %vm752 = vmand %vm750, %vm751
      %v753 = vsel %vm752, 1, 0
      %vm754 = vcmp.eq.s32.totalorder %v753, 1
      %v755 = vsel %vm754, %v720, 0.0
      %v756 = vsel %vm754, %v721, 0.0
      %v757 = vsel %vm754, %v722, 0.0
      %v758 = vsel %vm754, %v723, 0.0
      %v759 = vsel %vm754, %v724, 0.0
      %v760 = vsel %vm754, %v725, 0.0
      %v761 = vsel %vm754, %v726, 0.0
      %v762 = vsel %vm754, %v727, 0.0
      %v763 = vsel %vm754, %v728, 0.0
      %v764 = vsel %vm754, %v729, 0.0
      %v765 = vsel %vm754, %v730, 0.0
      %v766 = vsel %vm754, %v731, 0.0
      %v767 = vsel %vm754, %v732, 0.0
      %v768 = vsel %vm754, %v733, 0.0
      %v769 = vsel %vm754, %v734, 0.0
      %v770 = vsel %vm754, %v735, 0.0
      %v771 = vsel %vm754, %v736, 0.0
      %v772 = vsel %vm754, %v737, 0.0
      %v773 = vsel %vm754, %v738, 0.0
      %v774 = vsel %vm754, %v739, 0.0
      %v775 = vsel %vm754, %v740, 0.0
      %v776 = vsel %vm754, %v741, 0.0
      %v777 = vsel %vm754, %v742, 0.0
      %v778 = vsel %vm754, %v743, 0.0
      %v779 = vsel %vm754, %v744, 0.0
      %v780 = vsel %vm754, %v745, 0.0
      %v781 = vsel %vm754, %v746, 0.0
      %v782 = vsel %vm754, %v747, 0.0
      %v783 = vsel %vm754, %v748, 0.0
      %v784 = vsel %vm754, %v749, 0.0
      %v785 = vadd.f32 %v690, %v755
      %v786 = vadd.f32 %v691, %v756
      %v787 = vadd.f32 %v692, %v757
      %v788 = vadd.f32 %v693, %v758
      %v789 = vadd.f32 %v694, %v759
      %v790 = vadd.f32 %v695, %v760
      %v791 = vadd.f32 %v696, %v761
      %v792 = vadd.f32 %v697, %v762
      %v793 = vadd.f32 %v698, %v763
      %v794 = vadd.f32 %v699, %v764
      %v795 = vadd.f32 %v700, %v765
      %v796 = vadd.f32 %v701, %v766
      %v797 = vadd.f32 %v702, %v767
      %v798 = vadd.f32 %v703, %v768
      %v799 = vadd.f32 %v704, %v769
      %v800 = vadd.f32 %v705, %v770
      %v801 = vadd.f32 %v706, %v771
      %v802 = vadd.f32 %v707, %v772
      %v803 = vadd.f32 %v708, %v773
      %v804 = vadd.f32 %v709, %v774
      %v805 = vadd.f32 %v710, %v775
      %v806 = vadd.f32 %v711, %v776
      %v807 = vadd.f32 %v712, %v777
      %v808 = vadd.f32 %v713, %v778
      %v809 = vadd.f32 %v714, %v779
      %v810 = vadd.f32 %v715, %v780
      %v811 = vadd.f32 %v716, %v781
      %v812 = vadd.f32 %v717, %v782
      %v813 = vadd.f32 %v718, %v783
      %v814 = vadd.f32 %v719, %v784
      %v815 = vld [vmem:[#allocation2 + $0xf0] sm:$0xff]
      %v816 = vld [vmem:[#allocation2 + $0xf8] sm:$0xff]
      %v817 = vld [vmem:[#allocation2 + $0x100] sm:$0xff]
      %vm818 = vcmp.ge.s32.totalorder %v529, 24
      %vm819 = vcmp.lt.s32.totalorder %v529, 32
      %vm820 = vmand %vm818, %vm819
      %v821 = vsel %vm820, 1, 0
      %vm822 = vcmp.eq.s32.totalorder %v821, 1
      %v823 = vsel %vm822, %v533, 0.0
      %v824 = vsel %vm822, %v534, 0.0
      %v825 = vsel %vm822, %v535, 0.0
      %v826 = vsel %vm822, %v536, 0.0
      %v827 = vsel %vm822, %v537, 0.0
      %v828 = vsel %vm822, %v538, 0.0
      %v829 = vsel %vm822, %v539, 0.0
      %v830 = vsel %vm822, %v540, 0.0
      %v831 = vsel %vm822, %v541, 0.0
      %v832 = vsel %vm822, %v542, 0.0
      %v833 = vsel %vm822, %v543, 0.0
      %v834 = vsel %vm822, %v544, 0.0
      %v835 = vsel %vm822, %v545, 0.0
      %v836 = vsel %vm822, %v546, 0.0
      %v837 = vsel %vm822, %v547, 0.0
      %v838 = vsel %vm822, %v548, 0.0
      %v839 = vsel %vm822, %v549, 0.0
      %v840 = vsel %vm822, %v550, 0.0
      %v841 = vsel %vm822, %v551, 0.0
      %v842 = vsel %vm822, %v552, 0.0
      %v843 = vsel %vm822, %v553, 0.0
      %v844 = vsel %vm822, %v554, 0.0
      %v845 = vsel %vm822, %v555, 0.0
      %v846 = vsel %vm822, %v556, 0.0
      %v847 = vsel %vm822, %v557, 0.0
      %v848 = vsel %vm822, %v558, 0.0
      %v849 = vsel %vm822, %v559, 0.0
      %v850 = vsel %vm822, %v815, 0.0
      %v851 = vsel %vm822, %v816, 0.0
      %v852 = vsel %vm822, %v817, 0.0
      %v853 = vadd.f32 %v785, %v823
      %v854 = vadd.f32 %v786, %v824
      %v855 = vadd.f32 %v787, %v825
      %v856 = vadd.f32 %v788, %v826
      %v857 = vadd.f32 %v789, %v827
      %v858 = vadd.f32 %v790, %v828
      %v859 = vadd.f32 %v791, %v829
      %v860 = vadd.f32 %v792, %v830
      %v861 = vadd.f32 %v793, %v831
      %v862 = vadd.f32 %v794, %v832
      %v863 = vadd.f32 %v795, %v833
      %v864 = vadd.f32 %v796, %v834
      %v865 = vadd.f32 %v797, %v835
      %v866 = vadd.f32 %v798, %v836
      %v867 = vadd.f32 %v799, %v837
      %v868 = vadd.f32 %v800, %v838
      %v869 = vadd.f32 %v801, %v839
      %v870 = vadd.f32 %v802, %v840
      %v871 = vadd.f32 %v803, %v841
      %v872 = vadd.f32 %v804, %v842
      %v873 = vadd.f32 %v805, %v843
      %v874 = vadd.f32 %v806, %v844
      %v875 = vadd.f32 %v807, %v845
      %v876 = vadd.f32 %v808, %v846
      %v877 = vadd.f32 %v809, %v847
      %v878 = vadd.f32 %v810, %v848
      %v879 = vadd.f32 %v811, %v849
      %v880 = vadd.f32 %v812, %v850
      %v881 = vadd.f32 %v813, %v851
      %v882 = vadd.f32 %v814, %v852
      %v883 = vld [vmem:[#allocation2 + $0xf1] sm:$0xff]
      %v884 = vld [vmem:[#allocation2 + $0xf9] sm:$0xff]
      %v885 = vld [vmem:[#allocation2 + $0x101] sm:$0xff]
      %vm886 = vcmp.ge.s32.totalorder %v529, 32
      %vm887 = vcmp.lt.s32.totalorder %v529, 40
      %vm888 = vmand %vm886, %vm887
      %v889 = vsel %vm888, 1, 0
      %vm890 = vcmp.eq.s32.totalorder %v889, 1
      %v891 = vsel %vm890, %v628, 0.0
      %v892 = vsel %vm890, %v629, 0.0
      %v893 = vsel %vm890, %v630, 0.0
      %v894 = vsel %vm890, %v631, 0.0
      %v895 = vsel %vm890, %v632, 0.0
      %v896 = vsel %vm890, %v633, 0.0
      %v897 = vsel %vm890, %v634, 0.0
      %v898 = vsel %vm890, %v635, 0.0
      %v899 = vsel %vm890, %v636, 0.0
      %v900 = vsel %vm890, %v637, 0.0
      %v901 = vsel %vm890, %v638, 0.0
      %v902 = vsel %vm890, %v639, 0.0
      %v903 = vsel %vm890, %v640, 0.0
      %v904 = vsel %vm890, %v641, 0.0
      %v905 = vsel %vm890, %v642, 0.0
      %v906 = vsel %vm890, %v643, 0.0
      %v907 = vsel %vm890, %v644, 0.0
      %v908 = vsel %vm890, %v645, 0.0
      %v909 = vsel %vm890, %v646, 0.0
      %v910 = vsel %vm890, %v647, 0.0
      %v911 = vsel %vm890, %v648, 0.0
      %v912 = vsel %vm890, %v649, 0.0
      %v913 = vsel %vm890, %v650, 0.0
      %v914 = vsel %vm890, %v651, 0.0
      %v915 = vsel %vm890, %v652, 0.0
      %v916 = vsel %vm890, %v653, 0.0
      %v917 = vsel %vm890, %v654, 0.0
      %v918 = vsel %vm890, %v883, 0.0
      %v919 = vsel %vm890, %v884, 0.0
      %v920 = vsel %vm890, %v885, 0.0
      %v921 = vadd.f32 %v853, %v891
      %v922 = vadd.f32 %v854, %v892
      %v923 = vadd.f32 %v855, %v893
      %v924 = vadd.f32 %v856, %v894
      %v925 = vadd.f32 %v857, %v895
      %v926 = vadd.f32 %v858, %v896
      %v927 = vadd.f32 %v859, %v897
      %v928 = vadd.f32 %v860, %v898
      %v929 = vadd.f32 %v861, %v899
      %v930 = vadd.f32 %v862, %v900
      %v931 = vadd.f32 %v863, %v901
      %v932 = vadd.f32 %v864, %v902
      %v933 = vadd.f32 %v865, %v903
      %v934 = vadd.f32 %v866, %v904
      %v935 = vadd.f32 %v867, %v905
      %v936 = vadd.f32 %v868, %v906
      %v937 = vadd.f32 %v869, %v907
      %v938 = vadd.f32 %v870, %v908
      %v939 = vadd.f32 %v871, %v909
      %v940 = vadd.f32 %v872, %v910
      %v941 = vadd.f32 %v873, %v911
      %v942 = vadd.f32 %v874, %v912
      %v943 = vadd.f32 %v875, %v913
      %v944 = vadd.f32 %v876, %v914
      %v945 = vadd.f32 %v877, %v915
      %v946 = vadd.f32 %v878, %v916
      %v947 = vadd.f32 %v879, %v917
      %v948 = vadd.f32 %v880, %v918
      %v949 = vadd.f32 %v881, %v919
      %v950 = vadd.f32 %v882, %v920
      %v951 = vld [vmem:[#allocation2 + $0xf2] sm:$0xff]
      %v952 = vld [vmem:[#allocation2 + $0xfa] sm:$0xff]
      %v953 = vld [vmem:[#allocation2 + $0x102] sm:$0xff]
      %vm954 = vcmp.ge.s32.totalorder %v529, 40
      %vm955 = vcmp.lt.s32.totalorder %v529, 48
      %vm956 = vmand %vm954, %vm955
      %v957 = vsel %vm956, 1, 0
      %vm958 = vcmp.eq.s32.totalorder %v957, 1
      %v959 = vsel %vm958, %v723, 0.0
      %v960 = vsel %vm958, %v724, 0.0
      %v961 = vsel %vm958, %v725, 0.0
      %v962 = vsel %vm958, %v726, 0.0
      %v963 = vsel %vm958, %v727, 0.0
      %v964 = vsel %vm958, %v728, 0.0
      %v965 = vsel %vm958, %v729, 0.0
      %v966 = vsel %vm958, %v730, 0.0
      %v967 = vsel %vm958, %v731, 0.0
      %v968 = vsel %vm958, %v732, 0.0
      %v969 = vsel %vm958, %v733, 0.0
      %v970 = vsel %vm958, %v734, 0.0
      %v971 = vsel %vm958, %v735, 0.0
      %v972 = vsel %vm958, %v736, 0.0
      %v973 = vsel %vm958, %v737, 0.0
      %v974 = vsel %vm958, %v738, 0.0
      %v975 = vsel %vm958, %v739, 0.0
      %v976 = vsel %vm958, %v740, 0.0
      %v977 = vsel %vm958, %v741, 0.0
      %v978 = vsel %vm958, %v742, 0.0
      %v979 = vsel %vm958, %v743, 0.0
      %v980 = vsel %vm958, %v744, 0.0
      %v981 = vsel %vm958, %v745, 0.0
      %v982 = vsel %vm958, %v746, 0.0
      %v983 = vsel %vm958, %v747, 0.0
      %v984 = vsel %vm958, %v748, 0.0
      %v985 = vsel %vm958, %v749, 0.0
      %v986 = vsel %vm958, %v951, 0.0
      %v987 = vsel %vm958, %v952, 0.0
      %v988 = vsel %vm958, %v953, 0.0
      %v989 = vadd.f32 %v921, %v959
      %v990 = vadd.f32 %v922, %v960
      %v991 = vadd.f32 %v923, %v961
      %v992 = vadd.f32 %v924, %v962
      %v993 = vadd.f32 %v925, %v963
      %v994 = vadd.f32 %v926, %v964
      %v995 = vadd.f32 %v927, %v965
      %v996 = vadd.f32 %v928, %v966
      %v997 = vadd.f32 %v929, %v967
      %v998 = vadd.f32 %v930, %v968
      %v999 = vadd.f32 %v931, %v969
      %v1000 = vadd.f32 %v932, %v970
      %v1001 = vadd.f32 %v933, %v971
      %v1002 = vadd.f32 %v934, %v972
      %v1003 = vadd.f32 %v935, %v973
      %v1004 = vadd.f32 %v936, %v974
      %v1005 = vadd.f32 %v937, %v975
      %v1006 = vadd.f32 %v938, %v976
      %v1007 = vadd.f32 %v939, %v977
      %v1008 = vadd.f32 %v940, %v978
      %v1009 = vadd.f32 %v941, %v979
      %v1010 = vadd.f32 %v942, %v980
      %v1011 = vadd.f32 %v943, %v981
      %v1012 = vadd.f32 %v944, %v982
      %v1013 = vadd.f32 %v945, %v983
      %v1014 = vadd.f32 %v946, %v984
      %v1015 = vadd.f32 %v947, %v985
      %v1016 = vadd.f32 %v948, %v986
      %v1017 = vadd.f32 %v949, %v987
      %v1018 = vadd.f32 %v950, %v988
      %v1019 = vld [vmem:[#allocation2 + $0x108] sm:$0xff]
      %v1020 = vld [vmem:[#allocation2 + $0x110] sm:$0xff]
      %v1021 = vld [vmem:[#allocation2 + $0x118] sm:$0xff]
      %vm1022 = vcmp.ge.s32.totalorder %v529, 48
      %vm1023 = vcmp.lt.s32.totalorder %v529, 56
      %vm1024 = vmand %vm1022, %vm1023
      %v1025 = vsel %vm1024, 1, 0
      %vm1026 = vcmp.eq.s32.totalorder %v1025, 1
      %v1027 = vsel %vm1026, %v536, 0.0
      %v1028 = vsel %vm1026, %v537, 0.0
      %v1029 = vsel %vm1026, %v538, 0.0
      %v1030 = vsel %vm1026, %v539, 0.0
      %v1031 = vsel %vm1026, %v540, 0.0
      %v1032 = vsel %vm1026, %v541, 0.0
      %v1033 = vsel %vm1026, %v542, 0.0
      %v1034 = vsel %vm1026, %v543, 0.0
      %v1035 = vsel %vm1026, %v544, 0.0
      %v1036 = vsel %vm1026, %v545, 0.0
      %v1037 = vsel %vm1026, %v546, 0.0
      %v1038 = vsel %vm1026, %v547, 0.0
      %v1039 = vsel %vm1026, %v548, 0.0
      %v1040 = vsel %vm1026, %v549, 0.0
      %v1041 = vsel %vm1026, %v550, 0.0
      %v1042 = vsel %vm1026, %v551, 0.0
      %v1043 = vsel %vm1026, %v552, 0.0
      %v1044 = vsel %vm1026, %v553, 0.0
      %v1045 = vsel %vm1026, %v554, 0.0
      %v1046 = vsel %vm1026, %v555, 0.0
      %v1047 = vsel %vm1026, %v556, 0.0
      %v1048 = vsel %vm1026, %v557, 0.0
      %v1049 = vsel %vm1026, %v558, 0.0
      %v1050 = vsel %vm1026, %v559, 0.0
      %v1051 = vsel %vm1026, %v815, 0.0
      %v1052 = vsel %vm1026, %v816, 0.0
      %v1053 = vsel %vm1026, %v817, 0.0
      %v1054 = vsel %vm1026, %v1019, 0.0
      %v1055 = vsel %vm1026, %v1020, 0.0
      %v1056 = vsel %vm1026, %v1021, 0.0
      %v1057 = vadd.f32 %v989, %v1027
      %v1058 = vadd.f32 %v990, %v1028
      %v1059 = vadd.f32 %v991, %v1029
      %v1060 = vadd.f32 %v992, %v1030
      %v1061 = vadd.f32 %v993, %v1031
      %v1062 = vadd.f32 %v994, %v1032
      %v1063 = vadd.f32 %v995, %v1033
      %v1064 = vadd.f32 %v996, %v1034
      %v1065 = vadd.f32 %v997, %v1035
      %v1066 = vadd.f32 %v998, %v1036
      %v1067 = vadd.f32 %v999, %v1037
      %v1068 = vadd.f32 %v1000, %v1038
      %v1069 = vadd.f32 %v1001, %v1039
      %v1070 = vadd.f32 %v1002, %v1040
      %v1071 = vadd.f32 %v1003, %v1041
      %v1072 = vadd.f32 %v1004, %v1042
      %v1073 = vadd.f32 %v1005, %v1043
      %v1074 = vadd.f32 %v1006, %v1044
      %v1075 = vadd.f32 %v1007, %v1045
      %v1076 = vadd.f32 %v1008, %v1046
      %v1077 = vadd.f32 %v1009, %v1047
      %v1078 = vadd.f32 %v1010, %v1048
      %v1079 = vadd.f32 %v1011, %v1049
      %v1080 = vadd.f32 %v1012, %v1050
      %v1081 = vadd.f32 %v1013, %v1051
      %v1082 = vadd.f32 %v1014, %v1052
      %v1083 = vadd.f32 %v1015, %v1053
      %v1084 = vadd.f32 %v1016, %v1054
      %v1085 = vadd.f32 %v1017, %v1055
      %v1086 = vadd.f32 %v1018, %v1056
      %v1087 = vld [vmem:[#allocation2 + $0x109] sm:$0xff]
      %v1088 = vld [vmem:[#allocation2 + $0x111] sm:$0xff]
      %v1089 = vld [vmem:[#allocation2 + $0x119] sm:$0xff]
      %vm1090 = vcmp.ge.s32.totalorder %v529, 56
      %vm1091 = vcmp.lt.s32.totalorder %v529, 64
      %vm1092 = vmand %vm1090, %vm1091
      %v1093 = vsel %vm1092, 1, 0
      %vm1094 = vcmp.eq.s32.totalorder %v1093, 1
      %v1095 = vsel %vm1094, %v631, 0.0
      %v1096 = vsel %vm1094, %v632, 0.0
      %v1097 = vsel %vm1094, %v633, 0.0
      %v1098 = vsel %vm1094, %v634, 0.0
      %v1099 = vsel %vm1094, %v635, 0.0
      %v1100 = vsel %vm1094, %v636, 0.0
      %v1101 = vsel %vm1094, %v637, 0.0
      %v1102 = vsel %vm1094, %v638, 0.0
      %v1103 = vsel %vm1094, %v639, 0.0
      %v1104 = vsel %vm1094, %v640, 0.0
      %v1105 = vsel %vm1094, %v641, 0.0
      %v1106 = vsel %vm1094, %v642, 0.0
      %v1107 = vsel %vm1094, %v643, 0.0
      %v1108 = vsel %vm1094, %v644, 0.0
      %v1109 = vsel %vm1094, %v645, 0.0
      %v1110 = vsel %vm1094, %v646, 0.0
      %v1111 = vsel %vm1094, %v647, 0.0
      %v1112 = vsel %vm1094, %v648, 0.0
      %v1113 = vsel %vm1094, %v649, 0.0
      %v1114 = vsel %vm1094, %v650, 0.0
      %v1115 = vsel %vm1094, %v651, 0.0
      %v1116 = vsel %vm1094, %v652, 0.0
      %v1117 = vsel %vm1094, %v653, 0.0
      %v1118 = vsel %vm1094, %v654, 0.0
      %v1119 = vsel %vm1094, %v883, 0.0
      %v1120 = vsel %vm1094, %v884, 0.0
      %v1121 = vsel %vm1094, %v885, 0.0
      %v1122 = vsel %vm1094, %v1087, 0.0
      %v1123 = vsel %vm1094, %v1088, 0.0
      %v1124 = vsel %vm1094, %v1089, 0.0
      %v1125 = vadd.f32 %v1057, %v1095
      %v1126 = vadd.f32 %v1058, %v1096
      %v1127 = vadd.f32 %v1059, %v1097
      %v1128 = vadd.f32 %v1060, %v1098
      %v1129 = vadd.f32 %v1061, %v1099
      %v1130 = vadd.f32 %v1062, %v1100
      %v1131 = vadd.f32 %v1063, %v1101
      %v1132 = vadd.f32 %v1064, %v1102
      %v1133 = vadd.f32 %v1065, %v1103
      %v1134 = vadd.f32 %v1066, %v1104
      %v1135 = vadd.f32 %v1067, %v1105
      %v1136 = vadd.f32 %v1068, %v1106
      %v1137 = vadd.f32 %v1069, %v1107
      %v1138 = vadd.f32 %v1070, %v1108
      %v1139 = vadd.f32 %v1071, %v1109
      %v1140 = vadd.f32 %v1072, %v1110
      %v1141 = vadd.f32 %v1073, %v1111
      %v1142 = vadd.f32 %v1074, %v1112
      %v1143 = vadd.f32 %v1075, %v1113
      %v1144 = vadd.f32 %v1076, %v1114
      %v1145 = vadd.f32 %v1077, %v1115
      %v1146 = vadd.f32 %v1078, %v1116
      %v1147 = vadd.f32 %v1079, %v1117
      %v1148 = vadd.f32 %v1080, %v1118
      %v1149 = vadd.f32 %v1081, %v1119
      %v1150 = vadd.f32 %v1082, %v1120
      %v1151 = vadd.f32 %v1083, %v1121
      %v1152 = vadd.f32 %v1084, %v1122
      %v1153 = vadd.f32 %v1085, %v1123
      %v1154 = vadd.f32 %v1086, %v1124
      %v1155 = vld [vmem:[#allocation2 + $0x10a] sm:$0xff]
      %v1156 = vld [vmem:[#allocation2 + $0x112] sm:$0xff]
      %v1157 = vld [vmem:[#allocation2 + $0x11a] sm:$0xff]
      %vm1158 = vcmp.ge.s32.totalorder %v529, 64
      %vm1159 = vcmp.lt.s32.totalorder %v529, 72
      %vm1160 = vmand %vm1158, %vm1159
      %v1161 = vsel %vm1160, 1, 0
      %vm1162 = vcmp.eq.s32.totalorder %v1161, 1
      %v1163 = vsel %vm1162, %v726, 0.0
      %v1164 = vsel %vm1162, %v727, 0.0
      %v1165 = vsel %vm1162, %v728, 0.0
      %v1166 = vsel %vm1162, %v729, 0.0
      %v1167 = vsel %vm1162, %v730, 0.0
      %v1168 = vsel %vm1162, %v731, 0.0
      %v1169 = vsel %vm1162, %v732, 0.0
      %v1170 = vsel %vm1162, %v733, 0.0
      %v1171 = vsel %vm1162, %v734, 0.0
      %v1172 = vsel %vm1162, %v735, 0.0
      %v1173 = vsel %vm1162, %v736, 0.0
      %v1174 = vsel %vm1162, %v737, 0.0
      %v1175 = vsel %vm1162, %v738, 0.0
      %v1176 = vsel %vm1162, %v739, 0.0
      %v1177 = vsel %vm1162, %v740, 0.0
      %v1178 = vsel %vm1162, %v741, 0.0
      %v1179 = vsel %vm1162, %v742, 0.0
      %v1180 = vsel %vm1162, %v743, 0.0
      %v1181 = vsel %vm1162, %v744, 0.0
      %v1182 = vsel %vm1162, %v745, 0.0
      %v1183 = vsel %vm1162, %v746, 0.0
      %v1184 = vsel %vm1162, %v747, 0.0
      %v1185 = vsel %vm1162, %v748, 0.0
      %v1186 = vsel %vm1162, %v749, 0.0
      %v1187 = vsel %vm1162, %v951, 0.0
      %v1188 = vsel %vm1162, %v952, 0.0
      %v1189 = vsel %vm1162, %v953, 0.0
      %v1190 = vsel %vm1162, %v1155, 0.0
      %v1191 = vsel %vm1162, %v1156, 0.0
      %v1192 = vsel %vm1162, %v1157, 0.0
      %v1193 = vadd.f32 %v1125, %v1163
      %v1194 = vadd.f32 %v1126, %v1164
      %v1195 = vadd.f32 %v1127, %v1165
      %v1196 = vadd.f32 %v1128, %v1166
      %v1197 = vadd.f32 %v1129, %v1167
      %v1198 = vadd.f32 %v1130, %v1168
      %v1199 = vadd.f32 %v1131, %v1169
      %v1200 = vadd.f32 %v1132, %v1170
      %v1201 = vadd.f32 %v1133, %v1171
      %v1202 = vadd.f32 %v1134, %v1172
      %v1203 = vadd.f32 %v1135, %v1173
      %v1204 = vadd.f32 %v1136, %v1174
      %v1205 = vadd.f32 %v1137, %v1175
      %v1206 = vadd.f32 %v1138, %v1176
      %v1207 = vadd.f32 %v1139, %v1177
      %v1208 = vadd.f32 %v1140, %v1178
      %v1209 = vadd.f32 %v1141, %v1179
      %v1210 = vadd.f32 %v1142, %v1180
      %v1211 = vadd.f32 %v1143, %v1181
      %v1212 = vadd.f32 %v1144, %v1182
      %v1213 = vadd.f32 %v1145, %v1183
      %v1214 = vadd.f32 %v1146, %v1184
      %v1215 = vadd.f32 %v1147, %v1185
      %v1216 = vadd.f32 %v1148, %v1186
      %v1217 = vadd.f32 %v1149, %v1187
      %v1218 = vadd.f32 %v1150, %v1188
      %v1219 = vadd.f32 %v1151, %v1189
      %v1220 = vadd.f32 %v1152, %v1190
      %v1221 = vadd.f32 %v1153, %v1191
      %v1222 = vadd.f32 %v1154, %v1192
      %v1223 = vld [vmem:[%s2] sm:$0xff]
      %v1224 = vld [vmem:[%s2 + $0x8] sm:$0xff]
      %v1225 = vld [vmem:[%s2 + $0x10] sm:$0xff]
      %v1226 = vld [vmem:[%s2 + $0x18] sm:$0xff]
      %v1227 = vld [vmem:[%s2 + $0x20] sm:$0xff]
      %v1228 = vld [vmem:[%s2 + $0x28] sm:$0xff]
      %v1229 = vld [vmem:[%s2 + $0x30] sm:$0xff]
      %v1230 = vld [vmem:[%s2 + $0x38] sm:$0xff]
      %v1231 = vld [vmem:[%s2 + $0x40] sm:$0xff]
      %v1232 = vld [vmem:[%s2 + $0x48] sm:$0xff]
      %v1233 = vld [vmem:[%s2 + $0x50] sm:$0xff]
      %v1234 = vld [vmem:[%s2 + $0x58] sm:$0xff]
      %v1235 = vld [vmem:[%s2 + $0x60] sm:$0xff]
      %v1236 = vld [vmem:[%s2 + $0x68] sm:$0xff]
      %v1237 = vld [vmem:[%s2 + $0x70] sm:$0xff]
      %v1238 = vld [vmem:[%s2 + $0x78] sm:$0xff]
      %v1239 = vld [vmem:[%s2 + $0x80] sm:$0xff]
      %v1240 = vld [vmem:[%s2 + $0x88] sm:$0xff]
      %v1241 = vld [vmem:[%s2 + $0x90] sm:$0xff]
      %v1242 = vld [vmem:[%s2 + $0x98] sm:$0xff]
      %v1243 = vld [vmem:[%s2 + $0xa0] sm:$0xff]
      %v1244 = vld [vmem:[%s2 + $0xa8] sm:$0xff]
      %v1245 = vld [vmem:[%s2 + $0xb0] sm:$0xff]
      %v1246 = vld [vmem:[%s2 + $0xb8] sm:$0xff]
      %v1247 = vld [vmem:[%s2 + $0xc0] sm:$0xff]
      %v1248 = vld [vmem:[%s2 + $0xc8] sm:$0xff]
      %v1249 = vld [vmem:[%s2 + $0xd0] sm:$0xff]
      %v1250 = vld [vmem:[%s2 + $0xd8] sm:$0xff]
      %v1251 = vld [vmem:[%s2 + $0xe0] sm:$0xff]
      %v1252 = vld [vmem:[%s2 + $0xe8] sm:$0xff]
      %v1253 = vld [vmem:[%s2 + $0xf0] sm:$0xff]
      %v1254 = vld [vmem:[%s2 + $0xf8] sm:$0xff]
      %v1255 = vld [vmem:[%s3] sm:$0x3]
      %v1257 = vperm.slane %v1255, 0
      %v1258 = vperm.slane %v1255, 1
      %1261 = vmatpush.msra.mxu0 %v1253
      %1262 = vmatpush.msra.mxu0 %v1251
      %1263 = vmatpush.msra.mxu0 %v1249
      %1264 = vmatpush.msra.mxu0 %v1247
      %1265 = vmatpush.msra.mxu0 %v1245
      %1266 = vmatpush.msra.mxu0 %v1243
      %1267 = vmatpush.msra.mxu0 %v1241
      %1268 = vmatpush.msra.mxu0 %v1239
      %1269 = vmatpush.msra.mxu0 %v1237
      %1270 = vmatpush.msra.mxu0 %v1235
      %1271 = vmatpush.msra.mxu0 %v1233
      %1272 = vmatpush.msra.mxu0 %v1231
      %1273 = vmatpush.msra.mxu0 %v1229
      %1274 = vmatpush.msra.mxu0 %v1227
      %1275 = vmatpush.msra.mxu0 %v1225
      %1276 = vmatpush.msra.mxu0 %v1223
      %1277 = vmatmul.f32.gmra.mxu0 %v1193
      %v1278 = vpop.f32.mrf.mxu0
      %v1279 = vadd.f32 %v1257, %v1278
      %1280 = vmatmul.f32.gmra.mxu0 %v1194
      %v1281 = vpop.f32.mrf.mxu0
      %v1282 = vadd.f32 %v1257, %v1281
      %1283 = vmatmul.f32.gmra.mxu0 %v1195
      %v1284 = vpop.f32.mrf.mxu0
      %v1285 = vadd.f32 %v1257, %v1284
      %1286 = vmatmul.f32.gmra.mxu0 %v1196
      %v1287 = vpop.f32.mrf.mxu0
      %v1288 = vadd.f32 %v1257, %v1287
      %1289 = vmatmul.f32.gmra.mxu0 %v1197
      %v1290 = vpop.f32.mrf.mxu0
      %v1291 = vadd.f32 %v1257, %v1290
      %1292 = vmatmul.f32.gmra.mxu0 %v1198
      %v1293 = vpop.f32.mrf.mxu0
      %v1294 = vadd.f32 %v1257, %v1293
      %1295 = vmatmul.f32.gmra.mxu0 %v1199
      %v1296 = vpop.f32.mrf.mxu0
      %v1297 = vadd.f32 %v1257, %v1296
      %1298 = vmatmul.f32.gmra.mxu0 %v1200
      %v1299 = vpop.f32.mrf.mxu0
      %v1300 = vadd.f32 %v1257, %v1299
      %1301 = vmatmul.f32.gmra.mxu0 %v1201
      %v1302 = vpop.f32.mrf.mxu0
      %v1303 = vadd.f32 %v1257, %v1302
      %1304 = vmatmul.f32.gmra.mxu0 %v1202
      %v1305 = vpop.f32.mrf.mxu0
      %v1306 = vadd.f32 %v1257, %v1305
      %1307 = vmatmul.f32.gmra.mxu0 %v1203
      %v1308 = vpop.f32.mrf.mxu0
      %v1309 = vadd.f32 %v1257, %v1308
      %1310 = vmatmul.f32.gmra.mxu0 %v1204
      %v1311 = vpop.f32.mrf.mxu0
      %v1312 = vadd.f32 %v1257, %v1311
      %1313 = vmatmul.f32.gmra.mxu0 %v1205
      %v1314 = vpop.f32.mrf.mxu0
      %v1315 = vadd.f32 %v1257, %v1314
      %1316 = vmatmul.f32.gmra.mxu0 %v1206
      %v1317 = vpop.f32.mrf.mxu0
      %v1318 = vadd.f32 %v1257, %v1317
      %1319 = vmatmul.f32.gmra.mxu0 %v1207
      %v1320 = vpop.f32.mrf.mxu0
      %v1321 = vadd.f32 %v1257, %v1320
      %1322 = vmatmul.f32.gmra.mxu0 %v1208
      %v1323 = vpop.f32.mrf.mxu0
      %v1324 = vadd.f32 %v1257, %v1323
      %1325 = vmatmul.f32.gmra.mxu0 %v1209
      %v1326 = vpop.f32.mrf.mxu0
      %v1327 = vadd.f32 %v1257, %v1326
      %1328 = vmatmul.f32.gmra.mxu0 %v1210
      %v1329 = vpop.f32.mrf.mxu0
      %v1330 = vadd.f32 %v1257, %v1329
      %1331 = vmatmul.f32.gmra.mxu0 %v1211
      %v1332 = vpop.f32.mrf.mxu0
      %v1333 = vadd.f32 %v1257, %v1332
      %1334 = vmatmul.f32.gmra.mxu0 %v1212
      %v1335 = vpop.f32.mrf.mxu0
      %v1336 = vadd.f32 %v1257, %v1335
      %1337 = vmatmul.f32.gmra.mxu0 %v1213
      %v1338 = vpop.f32.mrf.mxu0
      %v1339 = vadd.f32 %v1257, %v1338
      %1340 = vmatmul.f32.gmra.mxu0 %v1214
      %v1341 = vpop.f32.mrf.mxu0
      %v1342 = vadd.f32 %v1257, %v1341
      %1343 = vmatmul.f32.gmra.mxu0 %v1215
      %v1344 = vpop.f32.mrf.mxu0
      %v1345 = vadd.f32 %v1257, %v1344
      %1346 = vmatmul.f32.gmra.mxu0 %v1216
      %v1347 = vpop.f32.mrf.mxu0
      %v1348 = vadd.f32 %v1257, %v1347
      %1349 = vmatmul.f32.gmra.mxu0 %v1217
      %v1350 = vpop.f32.mrf.mxu0
      %v1351 = vadd.f32 %v1257, %v1350
      %1352 = vmatmul.f32.gmra.mxu0 %v1218
      %v1353 = vpop.f32.mrf.mxu0
      %v1354 = vadd.f32 %v1257, %v1353
      %1355 = vmatmul.f32.gmra.mxu0 %v1219
      %v1356 = vpop.f32.mrf.mxu0
      %v1357 = vadd.f32 %v1257, %v1356
      %1358 = vmatmul.f32.gmra.mxu0 %v1220
      %v1359 = vpop.f32.mrf.mxu0
      %v1360 = vadd.f32 %v1257, %v1359
      %1361 = vmatmul.f32.gmra.mxu0 %v1221
      %v1362 = vpop.f32.mrf.mxu0
      %v1363 = vadd.f32 %v1257, %v1362
      %1364 = vmatmul.f32.gmra.mxu0 %v1222
      %v1365 = vpop.f32.mrf.mxu0
      %v1366 = vadd.f32 %v1257, %v1365
      %1367 = vdwg.mxu0
      %1368 = vmatpush.msra.mxu0 %v1254
      %1369 = vmatpush.msra.mxu0 %v1252
      %1370 = vmatpush.msra.mxu0 %v1250
      %1371 = vmatpush.msra.mxu0 %v1248
      %1372 = vmatpush.msra.mxu0 %v1246
      %1373 = vmatpush.msra.mxu0 %v1244
      %1374 = vmatpush.msra.mxu0 %v1242
      %1375 = vmatpush.msra.mxu0 %v1240
      %1376 = vmatpush.msra.mxu0 %v1238
      %1377 = vmatpush.msra.mxu0 %v1236
      %1378 = vmatpush.msra.mxu0 %v1234
      %1379 = vmatpush.msra.mxu0 %v1232
      %1380 = vmatpush.msra.mxu0 %v1230
      %1381 = vmatpush.msra.mxu0 %v1228
      %1382 = vmatpush.msra.mxu0 %v1226
      %1383 = vmatpush.msra.mxu0 %v1224
      %1384 = vmatmul.f32.gmra.mxu0 %v1193
      %v1385 = vpop.f32.mrf.mxu0
      %v1386 = vadd.f32 %v1258, %v1385
      %1387 = vmatmul.f32.gmra.mxu0 %v1194
      %v1388 = vpop.f32.mrf.mxu0
      %v1389 = vadd.f32 %v1258, %v1388
      %1390 = vmatmul.f32.gmra.mxu0 %v1195
      %v1391 = vpop.f32.mrf.mxu0
      %v1392 = vadd.f32 %v1258, %v1391
      %1393 = vmatmul.f32.gmra.mxu0 %v1196
      %v1394 = vpop.f32.mrf.mxu0
      %v1395 = vadd.f32 %v1258, %v1394
      %1396 = vmatmul.f32.gmra.mxu0 %v1197
      %v1397 = vpop.f32.mrf.mxu0
      %v1398 = vadd.f32 %v1258, %v1397
      %1399 = vmatmul.f32.gmra.mxu0 %v1198
      %v1400 = vpop.f32.mrf.mxu0
      %v1401 = vadd.f32 %v1258, %v1400
      %1402 = vmatmul.f32.gmra.mxu0 %v1199
      %v1403 = vpop.f32.mrf.mxu0
      %v1404 = vadd.f32 %v1258, %v1403
      %1405 = vmatmul.f32.gmra.mxu0 %v1200
      %v1406 = vpop.f32.mrf.mxu0
      %v1407 = vadd.f32 %v1258, %v1406
      %1408 = vmatmul.f32.gmra.mxu0 %v1201
      %v1409 = vpop.f32.mrf.mxu0
      %v1410 = vadd.f32 %v1258, %v1409
      %1411 = vmatmul.f32.gmra.mxu0 %v1202
      %v1412 = vpop.f32.mrf.mxu0
      %v1413 = vadd.f32 %v1258, %v1412
      %1414 = vmatmul.f32.gmra.mxu0 %v1203
      %v1415 = vpop.f32.mrf.mxu0
      %v1416 = vadd.f32 %v1258, %v1415
      %1417 = vmatmul.f32.gmra.mxu0 %v1204
      %v1418 = vpop.f32.mrf.mxu0
      %v1419 = vadd.f32 %v1258, %v1418
      %1420 = vmatmul.f32.gmra.mxu0 %v1205
      %v1421 = vpop.f32.mrf.mxu0
      %v1422 = vadd.f32 %v1258, %v1421
      %1423 = vmatmul.f32.gmra.mxu0 %v1206
      %v1424 = vpop.f32.mrf.mxu0
      %v1425 = vadd.f32 %v1258, %v1424
      %1426 = vmatmul.f32.gmra.mxu0 %v1207
      %v1427 = vpop.f32.mrf.mxu0
      %v1428 = vadd.f32 %v1258, %v1427
      %1429 = vmatmul.f32.gmra.mxu0 %v1208
      %v1430 = vpop.f32.mrf.mxu0
      %v1431 = vadd.f32 %v1258, %v1430
      %1432 = vmatmul.f32.gmra.mxu0 %v1209
      %v1433 = vpop.f32.mrf.mxu0
      %v1434 = vadd.f32 %v1258, %v1433
      %1435 = vmatmul.f32.gmra.mxu0 %v1210
      %v1436 = vpop.f32.mrf.mxu0
      %v1437 = vadd.f32 %v1258, %v1436
      %1438 = vmatmul.f32.gmra.mxu0 %v1211
      %v1439 = vpop.f32.mrf.mxu0
      %v1440 = vadd.f32 %v1258, %v1439
      %1441 = vmatmul.f32.gmra.mxu0 %v1212
      %v1442 = vpop.f32.mrf.mxu0
      %v1443 = vadd.f32 %v1258, %v1442
      %1444 = vmatmul.f32.gmra.mxu0 %v1213
      %v1445 = vpop.f32.mrf.mxu0
      %v1446 = vadd.f32 %v1258, %v1445
      %1447 = vmatmul.f32.gmra.mxu0 %v1214
      %v1448 = vpop.f32.mrf.mxu0
      %v1449 = vadd.f32 %v1258, %v1448
      %1450 = vmatmul.f32.gmra.mxu0 %v1215
      %v1451 = vpop.f32.mrf.mxu0
      %v1452 = vadd.f32 %v1258, %v1451
      %1453 = vmatmul.f32.gmra.mxu0 %v1216
      %v1454 = vpop.f32.mrf.mxu0
      %v1455 = vadd.f32 %v1258, %v1454
      %1456 = vmatmul.f32.gmra.mxu0 %v1217
      %v1457 = vpop.f32.mrf.mxu0
      %v1458 = vadd.f32 %v1258, %v1457
      %1459 = vmatmul.f32.gmra.mxu0 %v1218
      %v1460 = vpop.f32.mrf.mxu0
      %v1461 = vadd.f32 %v1258, %v1460
      %1462 = vmatmul.f32.gmra.mxu0 %v1219
      %v1463 = vpop.f32.mrf.mxu0
      %v1464 = vadd.f32 %v1258, %v1463
      %1465 = vmatmul.f32.gmra.mxu0 %v1220
      %v1466 = vpop.f32.mrf.mxu0
      %v1467 = vadd.f32 %v1258, %v1466
      %1468 = vmatmul.f32.gmra.mxu0 %v1221
      %v1469 = vpop.f32.mrf.mxu0
      %v1470 = vadd.f32 %v1258, %v1469
      %1471 = vmatmul.f32.gmra.mxu0 %v1222
      %v1472 = vpop.f32.mrf.mxu0
      %v1473 = vadd.f32 %v1258, %v1472
      %1474 = vdwg.mxu0
      %v1475 = vmax.f32 %v1279, 0.0
      %v1476 = vmax.f32 %v1282, 0.0
      %v1477 = vmax.f32 %v1285, 0.0
      %v1478 = vmax.f32 %v1288, 0.0
      %v1479 = vmax.f32 %v1291, 0.0
      %v1480 = vmax.f32 %v1294, 0.0
      %v1481 = vmax.f32 %v1297, 0.0
      %v1482 = vmax.f32 %v1300, 0.0
      %v1483 = vmax.f32 %v1303, 0.0
      %v1484 = vmax.f32 %v1306, 0.0
      %v1485 = vmax.f32 %v1309, 0.0
      %v1486 = vmax.f32 %v1312, 0.0
      %v1487 = vmax.f32 %v1315, 0.0
      %v1488 = vmax.f32 %v1318, 0.0
      %v1489 = vmax.f32 %v1321, 0.0
      %v1490 = vmax.f32 %v1324, 0.0
      %v1491 = vmax.f32 %v1327, 0.0
      %v1492 = vmax.f32 %v1330, 0.0
      %v1493 = vmax.f32 %v1333, 0.0
      %v1494 = vmax.f32 %v1336, 0.0
      %v1495 = vmax.f32 %v1339, 0.0
      %v1496 = vmax.f32 %v1342, 0.0
      %v1497 = vmax.f32 %v1345, 0.0
      %v1498 = vmax.f32 %v1348, 0.0
      %v1499 = vmax.f32 %v1351, 0.0
      %v1500 = vmax.f32 %v1354, 0.0
      %v1501 = vmax.f32 %v1357, 0.0
      %v1502 = vmax.f32 %v1360, 0.0
      %v1503 = vmax.f32 %v1363, 0.0
      %v1504 = vmax.f32 %v1366, 0.0
      %v1505 = vmax.f32 %v1386, 0.0
      %v1506 = vmax.f32 %v1389, 0.0
      %v1507 = vmax.f32 %v1392, 0.0
      %v1508 = vmax.f32 %v1395, 0.0
      %v1509 = vmax.f32 %v1398, 0.0
      %v1510 = vmax.f32 %v1401, 0.0
      %v1511 = vmax.f32 %v1404, 0.0
      %v1512 = vmax.f32 %v1407, 0.0
      %v1513 = vmax.f32 %v1410, 0.0
      %v1514 = vmax.f32 %v1413, 0.0
      %v1515 = vmax.f32 %v1416, 0.0
      %v1516 = vmax.f32 %v1419, 0.0
      %v1517 = vmax.f32 %v1422, 0.0
      %v1518 = vmax.f32 %v1425, 0.0
      %v1519 = vmax.f32 %v1428, 0.0
      %v1520 = vmax.f32 %v1431, 0.0
      %v1521 = vmax.f32 %v1434, 0.0
      %v1522 = vmax.f32 %v1437, 0.0
      %v1523 = vmax.f32 %v1440, 0.0
      %v1524 = vmax.f32 %v1443, 0.0
      %v1525 = vmax.f32 %v1446, 0.0
      %v1526 = vmax.f32 %v1449, 0.0
      %v1527 = vmax.f32 %v1452, 0.0
      %v1528 = vmax.f32 %v1455, 0.0
      %v1529 = vmax.f32 %v1458, 0.0
      %v1530 = vmax.f32 %v1461, 0.0
      %v1531 = vmax.f32 %v1464, 0.0
      %v1532 = vmax.f32 %v1467, 0.0
      %v1533 = vmax.f32 %v1470, 0.0
      %v1534 = vmax.f32 %v1473, 0.0
      %v1535 = vadd.f32 %v1475, %v1505
      %v1536 = vadd.f32 %v1476, %v1506
      %v1537 = vadd.f32 %v1477, %v1507
      %v1538 = vadd.f32 %v1478, %v1508
      %v1539 = vadd.f32 %v1479, %v1509
      %v1540 = vadd.f32 %v1480, %v1510
      %v1541 = vadd.f32 %v1481, %v1511
      %v1542 = vadd.f32 %v1482, %v1512
      %v1543 = vadd.f32 %v1483, %v1513
      %v1544 = vadd.f32 %v1484, %v1514
      %v1545 = vadd.f32 %v1485, %v1515
      %v1546 = vadd.f32 %v1486, %v1516
      %v1547 = vadd.f32 %v1487, %v1517
      %v1548 = vadd.f32 %v1488, %v1518
      %v1549 = vadd.f32 %v1489, %v1519
      %v1550 = vadd.f32 %v1490, %v1520
      %v1551 = vadd.f32 %v1491, %v1521
      %v1552 = vadd.f32 %v1492, %v1522
      %v1553 = vadd.f32 %v1493, %v1523
      %v1554 = vadd.f32 %v1494, %v1524
      %v1555 = vadd.f32 %v1495, %v1525
      %v1556 = vadd.f32 %v1496, %v1526
      %v1557 = vadd.f32 %v1497, %v1527
      %v1558 = vadd.f32 %v1498, %v1528
      %v1559 = vadd.f32 %v1499, %v1529
      %v1560 = vadd.f32 %v1500, %v1530
      %v1561 = vadd.f32 %v1501, %v1531
      %v1562 = vadd.f32 %v1502, %v1532
      %v1563 = vadd.f32 %v1503, %v1533
      %v1564 = vadd.f32 %v1504, %v1534
      %1565 = vst [vmem:[%s197] sm:$0xff] %v1535
      %1566 = vst [vmem:[%s197 + $0x8] sm:$0xff] %v1536
      %1567 = vst [vmem:[%s197 + $0x10] sm:$0xff] %v1537
      %1568 = vst [vmem:[%s197 + $0x18] sm:$0xff] %v1538
      %1569 = vst [vmem:[%s197 + $0x20] sm:$0xff] %v1539
      %1570 = vst [vmem:[%s197 + $0x28] sm:$0xff] %v1540
      %1571 = vst [vmem:[%s197 + $0x30] sm:$0xff] %v1541
      %1572 = vst [vmem:[%s197 + $0x38] sm:$0xff] %v1542
      %1573 = vst [vmem:[%s197 + $0x40] sm:$0xff] %v1543
      %1574 = vst [vmem:[%s197 + $0x48] sm:$0xff] %v1544
      %1575 = vst [vmem:[%s197 + $0x50] sm:$0xff] %v1545
      %1576 = vst [vmem:[%s197 + $0x58] sm:$0xff] %v1546
      %1577 = vst [vmem:[%s197 + $0x60] sm:$0xff] %v1547
      %1578 = vst [vmem:[%s197 + $0x68] sm:$0xff] %v1548
      %1579 = vst [vmem:[%s197 + $0x70] sm:$0xff] %v1549
      %1580 = vst [vmem:[%s197 + $0x78] sm:$0xff] %v1550
      %1581 = vst [vmem:[%s197 + $0x80] sm:$0xff] %v1551
      %1582 = vst [vmem:[%s197 + $0x88] sm:$0xff] %v1552
      %1583 = vst [vmem:[%s197 + $0x90] sm:$0xff] %v1553
      %1584 = vst [vmem:[%s197 + $0x98] sm:$0xff] %v1554
      %1585 = vst [vmem:[%s197 + $0xa0] sm:$0xff] %v1555
      %1586 = vst [vmem:[%s197 + $0xa8] sm:$0xff] %v1556
      %1587 = vst [vmem:[%s197 + $0xb0] sm:$0xff] %v1557
      %1588 = vst [vmem:[%s197 + $0xb8] sm:$0xff] %v1558
      %1589 = vst [vmem:[%s197 + $0xc0] sm:$0xff] %v1559
      %1590 = vst [vmem:[%s197 + $0xc8] sm:$0xff] %v1560
      %1591 = vst [vmem:[%s197 + $0xd0] sm:$0xff] %v1561
      %1592 = vst [vmem:[%s197 + $0xd8] sm:$0xff] %v1562
      %1593 = vst [vmem:[%s197 + $0xe0] sm:$0xff] %v1563
      %1594 = vst [vmem:[%s197 + $0xe8] sm:$0xff] %v1564
      %v1595 = vld [vmem:[#allocation2 + $0xf0] sm:$0xff]
      %v1596 = vld [vmem:[#allocation2 + $0xf8] sm:$0xff]
      %v1597 = vld [vmem:[#allocation2 + $0x100] sm:$0xff]
      %v1598 = vld [vmem:[#allocation2 + $0x108] sm:$0xff]
      %v1599 = vld [vmem:[#allocation2 + $0x110] sm:$0xff]
      %v1600 = vld [vmem:[#allocation2 + $0x118] sm:$0xff]
      %v1601 = vld [vmem:[#allocation2 + $0x120] sm:$0xff]
      %v1602 = vld [vmem:[#allocation2 + $0x128] sm:$0xff]
      %v1603 = vld [vmem:[#allocation2 + $0x130] sm:$0xff]
      %v1604 = vld [vmem:[#allocation2 + $0x138] sm:$0xff]
      %v1605 = vld [vmem:[#allocation2 + $0x140] sm:$0xff]
      %v1606 = vld [vmem:[#allocation2 + $0x148] sm:$0xff]
      %v1607 = vld [vmem:[#allocation2 + $0x150] sm:$0xff]
      %v1608 = vld [vmem:[#allocation2 + $0x158] sm:$0xff]
      %v1609 = vld [vmem:[#allocation2 + $0x160] sm:$0xff]
      %v1610 = vld [vmem:[#allocation2 + $0x168] sm:$0xff]
      %v1611 = vld [vmem:[#allocation2 + $0x170] sm:$0xff]
      %v1612 = vld [vmem:[#allocation2 + $0x178] sm:$0xff]
      %v1613 = vsel %vm564, %v1595, 0.0
      %v1614 = vsel %vm564, %v1596, 0.0
      %v1615 = vsel %vm564, %v1597, 0.0
      %v1616 = vsel %vm564, %v1598, 0.0
      %v1617 = vsel %vm564, %v1599, 0.0
      %v1618 = vsel %vm564, %v1600, 0.0
      %v1619 = vsel %vm564, %v1601, 0.0
      %v1620 = vsel %vm564, %v1602, 0.0
      %v1621 = vsel %vm564, %v1603, 0.0
      %v1622 = vsel %vm564, %v1604, 0.0
      %v1623 = vsel %vm564, %v1605, 0.0
      %v1624 = vsel %vm564, %v1606, 0.0
      %v1625 = vsel %vm564, %v1607, 0.0
      %v1626 = vsel %vm564, %v1608, 0.0
      %v1627 = vsel %vm564, %v1609, 0.0
      %v1628 = vsel %vm564, %v1610, 0.0
      %v1629 = vsel %vm564, %v1611, 0.0
      %v1630 = vsel %vm564, %v1612, 0.0
      %v1631 = vadd.f32 %v1613, 0.0
      %v1632 = vadd.f32 %v1614, 0.0
      %v1633 = vadd.f32 %v1615, 0.0
      %v1634 = vadd.f32 %v1616, 0.0
      %v1635 = vadd.f32 %v1617, 0.0
      %v1636 = vadd.f32 %v1618, 0.0
      %v1637 = vadd.f32 %v1619, 0.0
      %v1638 = vadd.f32 %v1620, 0.0
      %v1639 = vadd.f32 %v1621, 0.0
      %v1640 = vadd.f32 %v1622, 0.0
      %v1641 = vadd.f32 %v1623, 0.0
      %v1642 = vadd.f32 %v1624, 0.0
      %v1643 = vadd.f32 %v1625, 0.0
      %v1644 = vadd.f32 %v1626, 0.0
      %v1645 = vadd.f32 %v1627, 0.0
      %v1646 = vadd.f32 %v1628, 0.0
      %v1647 = vadd.f32 %v1629, 0.0
      %v1648 = vadd.f32 %v1630, 0.0
      %v1649 = vld [vmem:[#allocation2 + $0xf1] sm:$0xff]
      %v1650 = vld [vmem:[#allocation2 + $0xf9] sm:$0xff]
      %v1651 = vld [vmem:[#allocation2 + $0x101] sm:$0xff]
      %v1652 = vld [vmem:[#allocation2 + $0x109] sm:$0xff]
      %v1653 = vld [vmem:[#allocation2 + $0x111] sm:$0xff]
      %v1654 = vld [vmem:[#allocation2 + $0x119] sm:$0xff]
      %v1655 = vld [vmem:[#allocation2 + $0x121] sm:$0xff]
      %v1656 = vld [vmem:[#allocation2 + $0x129] sm:$0xff]
      %v1657 = vld [vmem:[#allocation2 + $0x131] sm:$0xff]
      %v1658 = vld [vmem:[#allocation2 + $0x139] sm:$0xff]
      %v1659 = vld [vmem:[#allocation2 + $0x141] sm:$0xff]
      %v1660 = vld [vmem:[#allocation2 + $0x149] sm:$0xff]
      %v1661 = vld [vmem:[#allocation2 + $0x151] sm:$0xff]
      %v1662 = vld [vmem:[#allocation2 + $0x159] sm:$0xff]
      %v1663 = vld [vmem:[#allocation2 + $0x161] sm:$0xff]
      %v1664 = vld [vmem:[#allocation2 + $0x169] sm:$0xff]
      %v1665 = vld [vmem:[#allocation2 + $0x171] sm:$0xff]
      %v1666 = vld [vmem:[#allocation2 + $0x179] sm:$0xff]
      %v1667 = vsel %vm659, %v1649, 0.0
      %v1668 = vsel %vm659, %v1650, 0.0
      %v1669 = vsel %vm659, %v1651, 0.0
      %v1670 = vsel %vm659, %v1652, 0.0
      %v1671 = vsel %vm659, %v1653, 0.0
      %v1672 = vsel %vm659, %v1654, 0.0
      %v1673 = vsel %vm659, %v1655, 0.0
      %v1674 = vsel %vm659, %v1656, 0.0
      %v1675 = vsel %vm659, %v1657, 0.0
      %v1676 = vsel %vm659, %v1658, 0.0
      %v1677 = vsel %vm659, %v1659, 0.0
      %v1678 = vsel %vm659, %v1660, 0.0
      %v1679 = vsel %vm659, %v1661, 0.0
      %v1680 = vsel %vm659, %v1662, 0.0
      %v1681 = vsel %vm659, %v1663, 0.0
      %v1682 = vsel %vm659, %v1664, 0.0
      %v1683 = vsel %vm659, %v1665, 0.0
      %v1684 = vsel %vm659, %v1666, 0.0
      %v1685 = vadd.f32 %v1631, %v1667
      %v1686 = vadd.f32 %v1632, %v1668
      %v1687 = vadd.f32 %v1633, %v1669
      %v1688 = vadd.f32 %v1634, %v1670
      %v1689 = vadd.f32 %v1635, %v1671
      %v1690 = vadd.f32 %v1636, %v1672
      %v1691 = vadd.f32 %v1637, %v1673
      %v1692 = vadd.f32 %v1638, %v1674
      %v1693 = vadd.f32 %v1639, %v1675
      %v1694 = vadd.f32 %v1640, %v1676
      %v1695 = vadd.f32 %v1641, %v1677
      %v1696 = vadd.f32 %v1642, %v1678
      %v1697 = vadd.f32 %v1643, %v1679
      %v1698 = vadd.f32 %v1644, %v1680
      %v1699 = vadd.f32 %v1645, %v1681
      %v1700 = vadd.f32 %v1646, %v1682
      %v1701 = vadd.f32 %v1647, %v1683
      %v1702 = vadd.f32 %v1648, %v1684
      %v1703 = vld [vmem:[#allocation2 + $0xf2] sm:$0xff]
      %v1704 = vld [vmem:[#allocation2 + $0xfa] sm:$0xff]
      %v1705 = vld [vmem:[#allocation2 + $0x102] sm:$0xff]
      %v1706 = vld [vmem:[#allocation2 + $0x10a] sm:$0xff]
      %v1707 = vld [vmem:[#allocation2 + $0x112] sm:$0xff]
      %v1708 = vld [vmem:[#allocation2 + $0x11a] sm:$0xff]
      %v1709 = vld [vmem:[#allocation2 + $0x122] sm:$0xff]
      %v1710 = vld [vmem:[#allocation2 + $0x12a] sm:$0xff]
      %v1711 = vld [vmem:[#allocation2 + $0x132] sm:$0xff]
      %v1712 = vld [vmem:[#allocation2 + $0x13a] sm:$0xff]
      %v1713 = vld [vmem:[#allocation2 + $0x142] sm:$0xff]
      %v1714 = vld [vmem:[#allocation2 + $0x14a] sm:$0xff]
      %v1715 = vld [vmem:[#allocation2 + $0x152] sm:$0xff]
      %v1716 = vld [vmem:[#allocation2 + $0x15a] sm:$0xff]
      %v1717 = vld [vmem:[#allocation2 + $0x162] sm:$0xff]
      %v1718 = vld [vmem:[#allocation2 + $0x16a] sm:$0xff]
      %v1719 = vld [vmem:[#allocation2 + $0x172] sm:$0xff]
      %v1720 = vld [vmem:[#allocation2 + $0x17a] sm:$0xff]
      %v1721 = vsel %vm754, %v1703, 0.0
      %v1722 = vsel %vm754, %v1704, 0.0
      %v1723 = vsel %vm754, %v1705, 0.0
      %v1724 = vsel %vm754, %v1706, 0.0
      %v1725 = vsel %vm754, %v1707, 0.0
      %v1726 = vsel %vm754, %v1708, 0.0
      %v1727 = vsel %vm754, %v1709, 0.0
      %v1728 = vsel %vm754, %v1710, 0.0
      %v1729 = vsel %vm754, %v1711, 0.0
      %v1730 = vsel %vm754, %v1712, 0.0
      %v1731 = vsel %vm754, %v1713, 0.0
      %v1732 = vsel %vm754, %v1714, 0.0
      %v1733 = vsel %vm754, %v1715, 0.0
      %v1734 = vsel %vm754, %v1716, 0.0
      %v1735 = vsel %vm754, %v1717, 0.0
      %v1736 = vsel %vm754, %v1718, 0.0
      %v1737 = vsel %vm754, %v1719, 0.0
      %v1738 = vsel %vm754, %v1720, 0.0
      %v1739 = vadd.f32 %v1685, %v1721
      %v1740 = vadd.f32 %v1686, %v1722
      %v1741 = vadd.f32 %v1687, %v1723
      %v1742 = vadd.f32 %v1688, %v1724
      %v1743 = vadd.f32 %v1689, %v1725
      %v1744 = vadd.f32 %v1690, %v1726
      %v1745 = vadd.f32 %v1691, %v1727
      %v1746 = vadd.f32 %v1692, %v1728
      %v1747 = vadd.f32 %v1693, %v1729
      %v1748 = vadd.f32 %v1694, %v1730
      %v1749 = vadd.f32 %v1695, %v1731
      %v1750 = vadd.f32 %v1696, %v1732
      %v1751 = vadd.f32 %v1697, %v1733
      %v1752 = vadd.f32 %v1698, %v1734
      %v1753 = vadd.f32 %v1699, %v1735
      %v1754 = vadd.f32 %v1700, %v1736
      %v1755 = vadd.f32 %v1701, %v1737
      %v1756 = vadd.f32 %v1702, %v1738
      %v1757 = vld [vmem:[#allocation2 + $0x180] sm:$0xff]
      %v1758 = vld [vmem:[#allocation2 + $0x188] sm:$0xff]
      %v1759 = vld [vmem:[#allocation2 + $0x190] sm:$0xff]
      %v1760 = vsel %vm822, %v1598, 0.0
      %v1761 = vsel %vm822, %v1599, 0.0
      %v1762 = vsel %vm822, %v1600, 0.0
      %v1763 = vsel %vm822, %v1601, 0.0
      %v1764 = vsel %vm822, %v1602, 0.0
      %v1765 = vsel %vm822, %v1603, 0.0
      %v1766 = vsel %vm822, %v1604, 0.0
      %v1767 = vsel %vm822, %v1605, 0.0
      %v1768 = vsel %vm822, %v1606, 0.0
      %v1769 = vsel %vm822, %v1607, 0.0
      %v1770 = vsel %vm822, %v1608, 0.0
      %v1771 = vsel %vm822, %v1609, 0.0
      %v1772 = vsel %vm822, %v1610, 0.0
      %v1773 = vsel %vm822, %v1611, 0.0
      %v1774 = vsel %vm822, %v1612, 0.0
      %v1775 = vsel %vm822, %v1757, 0.0
      %v1776 = vsel %vm822, %v1758, 0.0
      %v1777 = vsel %vm822, %v1759, 0.0
      %v1778 = vadd.f32 %v1739, %v1760
      %v1779 = vadd.f32 %v1740, %v1761
      %v1780 = vadd.f32 %v1741, %v1762
      %v1781 = vadd.f32 %v1742, %v1763
      %v1782 = vadd.f32 %v1743, %v1764
      %v1783 = vadd.f32 %v1744, %v1765
      %v1784 = vadd.f32 %v1745, %v1766
      %v1785 = vadd.f32 %v1746, %v1767
      %v1786 = vadd.f32 %v1747, %v1768
      %v1787 = vadd.f32 %v1748, %v1769
      %v1788 = vadd.f32 %v1749, %v1770
      %v1789 = vadd.f32 %v1750, %v1771
      %v1790 = vadd.f32 %v1751, %v1772
      %v1791 = vadd.f32 %v1752, %v1773
      %v1792 = vadd.f32 %v1753, %v1774
      %v1793 = vadd.f32 %v1754, %v1775
      %v1794 = vadd.f32 %v1755, %v1776
      %v1795 = vadd.f32 %v1756, %v1777
      %v1796 = vld [vmem:[#allocation2 + $0x181] sm:$0xff]
      %v1797 = vld [vmem:[#allocation2 + $0x189] sm:$0xff]
      %v1798 = vld [vmem:[#allocation2 + $0x191] sm:$0xff]
      %v1799 = vsel %vm890, %v1652, 0.0
      %v1800 = vsel %vm890, %v1653, 0.0
      %v1801 = vsel %vm890, %v1654, 0.0
      %v1802 = vsel %vm890, %v1655, 0.0
      %v1803 = vsel %vm890, %v1656, 0.0
      %v1804 = vsel %vm890, %v1657, 0.0
      %v1805 = vsel %vm890, %v1658, 0.0
      %v1806 = vsel %vm890, %v1659, 0.0
      %v1807 = vsel %vm890, %v1660, 0.0
      %v1808 = vsel %vm890, %v1661, 0.0
      %v1809 = vsel %vm890, %v1662, 0.0
      %v1810 = vsel %vm890, %v1663, 0.0
      %v1811 = vsel %vm890, %v1664, 0.0
      %v1812 = vsel %vm890, %v1665, 0.0
      %v1813 = vsel %vm890, %v1666, 0.0
      %v1814 = vsel %vm890, %v1796, 0.0
      %v1815 = vsel %vm890, %v1797, 0.0
      %v1816 = vsel %vm890, %v1798, 0.0
      %v1817 = vadd.f32 %v1778, %v1799
      %v1818 = vadd.f32 %v1779, %v1800
      %v1819 = vadd.f32 %v1780, %v1801
      %v1820 = vadd.f32 %v1781, %v1802
      %v1821 = vadd.f32 %v1782, %v1803
      %v1822 = vadd.f32 %v1783, %v1804
      %v1823 = vadd.f32 %v1784, %v1805
      %v1824 = vadd.f32 %v1785, %v1806
      %v1825 = vadd.f32 %v1786, %v1807
      %v1826 = vadd.f32 %v1787, %v1808
      %v1827 = vadd.f32 %v1788, %v1809
      %v1828 = vadd.f32 %v1789, %v1810
      %v1829 = vadd.f32 %v1790, %v1811
      %v1830 = vadd.f32 %v1791, %v1812
      %v1831 = vadd.f32 %v1792, %v1813
      %v1832 = vadd.f32 %v1793, %v1814
      %v1833 = vadd.f32 %v1794, %v1815
      %v1834 = vadd.f32 %v1795, %v1816
      %v1835 = vld [vmem:[#allocation2 + $0x182] sm:$0xff]
      %v1836 = vld [vmem:[#allocation2 + $0x18a] sm:$0xff]
      %v1837 = vld [vmem:[#allocation2 + $0x192] sm:$0xff]
      %v1838 = vsel %vm958, %v1706, 0.0
      %v1839 = vsel %vm958, %v1707, 0.0
      %v1840 = vsel %vm958, %v1708, 0.0
      %v1841 = vsel %vm958, %v1709, 0.0
      %v1842 = vsel %vm958, %v1710, 0.0
      %v1843 = vsel %vm958, %v1711, 0.0
      %v1844 = vsel %vm958, %v1712, 0.0
      %v1845 = vsel %vm958, %v1713, 0.0
      %v1846 = vsel %vm958, %v1714, 0.0
      %v1847 = vsel %vm958, %v1715, 0.0
      %v1848 = vsel %vm958, %v1716, 0.0
      %v1849 = vsel %vm958, %v1717, 0.0
      %v1850 = vsel %vm958, %v1718, 0.0
      %v1851 = vsel %vm958, %v1719, 0.0
      %v1852 = vsel %vm958, %v1720, 0.0
      %v1853 = vsel %vm958, %v1835, 0.0
      %v1854 = vsel %vm958, %v1836, 0.0
      %v1855 = vsel %vm958, %v1837, 0.0
      %v1856 = vadd.f32 %v1817, %v1838
      %v1857 = vadd.f32 %v1818, %v1839
      %v1858 = vadd.f32 %v1819, %v1840
      %v1859 = vadd.f32 %v1820, %v1841
      %v1860 = vadd.f32 %v1821, %v1842
      %v1861 = vadd.f32 %v1822, %v1843
      %v1862 = vadd.f32 %v1823, %v1844
      %v1863 = vadd.f32 %v1824, %v1845
      %v1864 = vadd.f32 %v1825, %v1846
      %v1865 = vadd.f32 %v1826, %v1847
      %v1866 = vadd.f32 %v1827, %v1848
      %v1867 = vadd.f32 %v1828, %v1849
      %v1868 = vadd.f32 %v1829, %v1850
      %v1869 = vadd.f32 %v1830, %v1851
      %v1870 = vadd.f32 %v1831, %v1852
      %v1871 = vadd.f32 %v1832, %v1853
      %v1872 = vadd.f32 %v1833, %v1854
      %v1873 = vadd.f32 %v1834, %v1855
      %v1874 = vld [vmem:[#allocation2 + $0x198] sm:$0xff]
      %v1875 = vld [vmem:[#allocation2 + $0x1a0] sm:$0xff]
      %v1876 = vld [vmem:[#allocation2 + $0x1a8] sm:$0xff]
      %v1877 = vsel %vm1026, %v1601, 0.0
      %v1878 = vsel %vm1026, %v1602, 0.0
      %v1879 = vsel %vm1026, %v1603, 0.0
      %v1880 = vsel %vm1026, %v1604, 0.0
      %v1881 = vsel %vm1026, %v1605, 0.0
      %v1882 = vsel %vm1026, %v1606, 0.0
      %v1883 = vsel %vm1026, %v1607, 0.0
      %v1884 = vsel %vm1026, %v1608, 0.0
      %v1885 = vsel %vm1026, %v1609, 0.0
      %v1886 = vsel %vm1026, %v1610, 0.0
      %v1887 = vsel %vm1026, %v1611, 0.0
      %v1888 = vsel %vm1026, %v1612, 0.0
      %v1889 = vsel %vm1026, %v1757, 0.0
      %v1890 = vsel %vm1026, %v1758, 0.0
      %v1891 = vsel %vm1026, %v1759, 0.0
      %v1892 = vsel %vm1026, %v1874, 0.0
      %v1893 = vsel %vm1026, %v1875, 0.0
      %v1894 = vsel %vm1026, %v1876, 0.0
      %v1895 = vadd.f32 %v1856, %v1877
      %v1896 = vadd.f32 %v1857, %v1878
      %v1897 = vadd.f32 %v1858, %v1879
      %v1898 = vadd.f32 %v1859, %v1880
      %v1899 = vadd.f32 %v1860, %v1881
      %v1900 = vadd.f32 %v1861, %v1882
      %v1901 = vadd.f32 %v1862, %v1883
      %v1902 = vadd.f32 %v1863, %v1884
      %v1903 = vadd.f32 %v1864, %v1885
      %v1904 = vadd.f32 %v1865, %v1886
      %v1905 = vadd.f32 %v1866, %v1887
      %v1906 = vadd.f32 %v1867, %v1888
      %v1907 = vadd.f32 %v1868, %v1889
      %v1908 = vadd.f32 %v1869, %v1890
      %v1909 = vadd.f32 %v1870, %v1891
      %v1910 = vadd.f32 %v1871, %v1892
      %v1911 = vadd.f32 %v1872, %v1893
      %v1912 = vadd.f32 %v1873, %v1894
      %v1913 = vld [vmem:[#allocation2 + $0x199] sm:$0xff]
      %v1914 = vld [vmem:[#allocation2 + $0x1a1] sm:$0xff]
      %v1915 = vld [vmem:[#allocation2 + $0x1a9] sm:$0xff]
      %v1916 = vsel %vm1094, %v1655, 0.0
      %v1917 = vsel %vm1094, %v1656, 0.0
      %v1918 = vsel %vm1094, %v1657, 0.0
      %v1919 = vsel %vm1094, %v1658, 0.0
      %v1920 = vsel %vm1094, %v1659, 0.0
      %v1921 = vsel %vm1094, %v1660, 0.0
      %v1922 = vsel %vm1094, %v1661, 0.0
      %v1923 = vsel %vm1094, %v1662, 0.0
      %v1924 = vsel %vm1094, %v1663, 0.0
      %v1925 = vsel %vm1094, %v1664, 0.0
      %v1926 = vsel %vm1094, %v1665, 0.0
      %v1927 = vsel %vm1094, %v1666, 0.0
      %v1928 = vsel %vm1094, %v1796, 0.0
      %v1929 = vsel %vm1094, %v1797, 0.0
      %v1930 = vsel %vm1094, %v1798, 0.0
      %v1931 = vsel %vm1094, %v1913, 0.0
      %v1932 = vsel %vm1094, %v1914, 0.0
      %v1933 = vsel %vm1094, %v1915, 0.0
      %v1934 = vadd.f32 %v1895, %v1916
      %v1935 = vadd.f32 %v1896, %v1917
      %v1936 = vadd.f32 %v1897, %v1918
      %v1937 = vadd.f32 %v1898, %v1919
      %v1938 = vadd.f32 %v1899, %v1920
      %v1939 = vadd.f32 %v1900, %v1921
      %v1940 = vadd.f32 %v1901, %v1922
      %v1941 = vadd.f32 %v1902, %v1923
      %v1942 = vadd.f32 %v1903, %v1924
      %v1943 = vadd.f32 %v1904, %v1925
      %v1944 = vadd.f32 %v1905, %v1926
      %v1945 = vadd.f32 %v1906, %v1927
      %v1946 = vadd.f32 %v1907, %v1928
      %v1947 = vadd.f32 %v1908, %v1929
      %v1948 = vadd.f32 %v1909, %v1930
      %v1949 = vadd.f32 %v1910, %v1931
      %v1950 = vadd.f32 %v1911, %v1932
      %v1951 = vadd.f32 %v1912, %v1933
      %v1952 = vld [vmem:[#allocation2 + $0x19a] sm:$0xff]
      %v1953 = vld [vmem:[#allocation2 + $0x1a2] sm:$0xff]
      %v1954 = vld [vmem:[#allocation2 + $0x1aa] sm:$0xff]
      %v1955 = vsel %vm1162, %v1709, 0.0
      %v1956 = vsel %vm1162, %v1710, 0.0
      %v1957 = vsel %vm1162, %v1711, 0.0
      %v1958 = vsel %vm1162, %v1712, 0.0
      %v1959 = vsel %vm1162, %v1713, 0.0
      %v1960 = vsel %vm1162, %v1714, 0.0
      %v1961 = vsel %vm1162, %v1715, 0.0
      %v1962 = vsel %vm1162, %v1716, 0.0
      %v1963 = vsel %vm1162, %v1717, 0.0
      %v1964 = vsel %vm1162, %v1718, 0.0
      %v1965 = vsel %vm1162, %v1719, 0.0
      %v1966 = vsel %vm1162, %v1720, 0.0
      %v1967 = vsel %vm1162, %v1835, 0.0
      %v1968 = vsel %vm1162, %v1836, 0.0
      %v1969 = vsel %vm1162, %v1837, 0.0
      %v1970 = vsel %vm1162, %v1952, 0.0
      %v1971 = vsel %vm1162, %v1953, 0.0
      %v1972 = vsel %vm1162, %v1954, 0.0
      %v1973 = vadd.f32 %v1934, %v1955
      %v1974 = vadd.f32 %v1935, %v1956
      %v1975 = vadd.f32 %v1936, %v1957
      %v1976 = vadd.f32 %v1937, %v1958
      %v1977 = vadd.f32 %v1938, %v1959
      %v1978 = vadd.f32 %v1939, %v1960
      %v1979 = vadd.f32 %v1940, %v1961
      %v1980 = vadd.f32 %v1941, %v1962
      %v1981 = vadd.f32 %v1942, %v1963
      %v1982 = vadd.f32 %v1943, %v1964
      %v1983 = vadd.f32 %v1944, %v1965
      %v1984 = vadd.f32 %v1945, %v1966
      %v1985 = vadd.f32 %v1946, %v1967
      %v1986 = vadd.f32 %v1947, %v1968
      %v1987 = vadd.f32 %v1948, %v1969
      %v1988 = vadd.f32 %v1949, %v1970
      %v1989 = vadd.f32 %v1950, %v1971
      %v1990 = vadd.f32 %v1951, %v1972
      %v1991 = vld [vmem:[%s2] sm:$0xff]
      %v1992 = vld [vmem:[%s2 + $0x8] sm:$0xff]
      %v1993 = vld [vmem:[%s2 + $0x10] sm:$0xff]
      %v1994 = vld [vmem:[%s2 + $0x18] sm:$0xff]
      %v1995 = vld [vmem:[%s2 + $0x20] sm:$0xff]
      %v1996 = vld [vmem:[%s2 + $0x28] sm:$0xff]
      %v1997 = vld [vmem:[%s2 + $0x30] sm:$0xff]
      %v1998 = vld [vmem:[%s2 + $0x38] sm:$0xff]
      %v1999 = vld [vmem:[%s2 + $0x40] sm:$0xff]
      %v2000 = vld [vmem:[%s2 + $0x48] sm:$0xff]
      %v2001 = vld [vmem:[%s2 + $0x50] sm:$0xff]
      %v2002 = vld [vmem:[%s2 + $0x58] sm:$0xff]
      %v2003 = vld [vmem:[%s2 + $0x60] sm:$0xff]
      %v2004 = vld [vmem:[%s2 + $0x68] sm:$0xff]
      %v2005 = vld [vmem:[%s2 + $0x70] sm:$0xff]
      %v2006 = vld [vmem:[%s2 + $0x78] sm:$0xff]
      %v2007 = vld [vmem:[%s2 + $0x80] sm:$0xff]
      %v2008 = vld [vmem:[%s2 + $0x88] sm:$0xff]
      %v2009 = vld [vmem:[%s2 + $0x90] sm:$0xff]
      %v2010 = vld [vmem:[%s2 + $0x98] sm:$0xff]
      %v2011 = vld [vmem:[%s2 + $0xa0] sm:$0xff]
      %v2012 = vld [vmem:[%s2 + $0xa8] sm:$0xff]
      %v2013 = vld [vmem:[%s2 + $0xb0] sm:$0xff]
      %v2014 = vld [vmem:[%s2 + $0xb8] sm:$0xff]
      %v2015 = vld [vmem:[%s2 + $0xc0] sm:$0xff]
      %v2016 = vld [vmem:[%s2 + $0xc8] sm:$0xff]
      %v2017 = vld [vmem:[%s2 + $0xd0] sm:$0xff]
      %v2018 = vld [vmem:[%s2 + $0xd8] sm:$0xff]
      %v2019 = vld [vmem:[%s2 + $0xe0] sm:$0xff]
      %v2020 = vld [vmem:[%s2 + $0xe8] sm:$0xff]
      %v2021 = vld [vmem:[%s2 + $0xf0] sm:$0xff]
      %v2022 = vld [vmem:[%s2 + $0xf8] sm:$0xff]
      %v2023 = vld [vmem:[%s3] sm:$0x3]
      %v2025 = vperm.slane %v2023, 0
      %v2026 = vperm.slane %v2023, 1
      %2029 = vmatpush.msra.mxu0 %v2021
      %2030 = vmatpush.msra.mxu0 %v2019
      %2031 = vmatpush.msra.mxu0 %v2017
      %2032 = vmatpush.msra.mxu0 %v2015
      %2033 = vmatpush.msra.mxu0 %v2013
      %2034 = vmatpush.msra.mxu0 %v2011
      %2035 = vmatpush.msra.mxu0 %v2009
      %2036 = vmatpush.msra.mxu0 %v2007
      %2037 = vmatpush.msra.mxu0 %v2005
      %2038 = vmatpush.msra.mxu0 %v2003
      %2039 = vmatpush.msra.mxu0 %v2001
      %2040 = vmatpush.msra.mxu0 %v1999
      %2041 = vmatpush.msra.mxu0 %v1997
      %2042 = vmatpush.msra.mxu0 %v1995
      %2043 = vmatpush.msra.mxu0 %v1993
      %2044 = vmatpush.msra.mxu0 %v1991
      %2045 = vmatmul.f32.gmra.mxu0 %v1973
      %v2046 = vpop.f32.mrf.mxu0
      %v2047 = vadd.f32 %v2025, %v2046
      %2048 = vmatmul.f32.gmra.mxu0 %v1974
      %v2049 = vpop.f32.mrf.mxu0
      %v2050 = vadd.f32 %v2025, %v2049
      %2051 = vmatmul.f32.gmra.mxu0 %v1975
      %v2052 = vpop.f32.mrf.mxu0
      %v2053 = vadd.f32 %v2025, %v2052
      %2054 = vmatmul.f32.gmra.mxu0 %v1976
      %v2055 = vpop.f32.mrf.mxu0
      %v2056 = vadd.f32 %v2025, %v2055
      %2057 = vmatmul.f32.gmra.mxu0 %v1977
      %v2058 = vpop.f32.mrf.mxu0
      %v2059 = vadd.f32 %v2025, %v2058
      %2060 = vmatmul.f32.gmra.mxu0 %v1978
      %v2061 = vpop.f32.mrf.mxu0
      %v2062 = vadd.f32 %v2025, %v2061
      %2063 = vmatmul.f32.gmra.mxu0 %v1979
      %v2064 = vpop.f32.mrf.mxu0
      %v2065 = vadd.f32 %v2025, %v2064
      %2066 = vmatmul.f32.gmra.mxu0 %v1980
      %v2067 = vpop.f32.mrf.mxu0
      %v2068 = vadd.f32 %v2025, %v2067
      %2069 = vmatmul.f32.gmra.mxu0 %v1981
      %v2070 = vpop.f32.mrf.mxu0
      %v2071 = vadd.f32 %v2025, %v2070
      %2072 = vmatmul.f32.gmra.mxu0 %v1982
      %v2073 = vpop.f32.mrf.mxu0
      %v2074 = vadd.f32 %v2025, %v2073
      %2075 = vmatmul.f32.gmra.mxu0 %v1983
      %v2076 = vpop.f32.mrf.mxu0
      %v2077 = vadd.f32 %v2025, %v2076
      %2078 = vmatmul.f32.gmra.mxu0 %v1984
      %v2079 = vpop.f32.mrf.mxu0
      %v2080 = vadd.f32 %v2025, %v2079
      %2081 = vmatmul.f32.gmra.mxu0 %v1985
      %v2082 = vpop.f32.mrf.mxu0
      %v2083 = vadd.f32 %v2025, %v2082
      %2084 = vmatmul.f32.gmra.mxu0 %v1986
      %v2085 = vpop.f32.mrf.mxu0
      %v2086 = vadd.f32 %v2025, %v2085
      %2087 = vmatmul.f32.gmra.mxu0 %v1987
      %v2088 = vpop.f32.mrf.mxu0
      %v2089 = vadd.f32 %v2025, %v2088
      %2090 = vmatmul.f32.gmra.mxu0 %v1988
      %v2091 = vpop.f32.mrf.mxu0
      %v2092 = vadd.f32 %v2025, %v2091
      %2093 = vmatmul.f32.gmra.mxu0 %v1989
      %v2094 = vpop.f32.mrf.mxu0
      %v2095 = vadd.f32 %v2025, %v2094
      %2096 = vmatmul.f32.gmra.mxu0 %v1990
      %v2097 = vpop.f32.mrf.mxu0
      %v2098 = vadd.f32 %v2025, %v2097
      %2099 = vdwg.mxu0
      %2100 = vmatpush.msra.mxu0 %v2022
      %2101 = vmatpush.msra.mxu0 %v2020
      %2102 = vmatpush.msra.mxu0 %v2018
      %2103 = vmatpush.msra.mxu0 %v2016
      %2104 = vmatpush.msra.mxu0 %v2014
      %2105 = vmatpush.msra.mxu0 %v2012
      %2106 = vmatpush.msra.mxu0 %v2010
      %2107 = vmatpush.msra.mxu0 %v2008
      %2108 = vmatpush.msra.mxu0 %v2006
      %2109 = vmatpush.msra.mxu0 %v2004
      %2110 = vmatpush.msra.mxu0 %v2002
      %2111 = vmatpush.msra.mxu0 %v2000
      %2112 = vmatpush.msra.mxu0 %v1998
      %2113 = vmatpush.msra.mxu0 %v1996
      %2114 = vmatpush.msra.mxu0 %v1994
      %2115 = vmatpush.msra.mxu0 %v1992
      %2116 = vmatmul.f32.gmra.mxu0 %v1973
      %v2117 = vpop.f32.mrf.mxu0
      %v2118 = vadd.f32 %v2026, %v2117
      %2119 = vmatmul.f32.gmra.mxu0 %v1974
      %v2120 = vpop.f32.mrf.mxu0
      %v2121 = vadd.f32 %v2026, %v2120
      %2122 = vmatmul.f32.gmra.mxu0 %v1975
      %v2123 = vpop.f32.mrf.mxu0
      %v2124 = vadd.f32 %v2026, %v2123
      %2125 = vmatmul.f32.gmra.mxu0 %v1976
      %v2126 = vpop.f32.mrf.mxu0
      %v2127 = vadd.f32 %v2026, %v2126
      %2128 = vmatmul.f32.gmra.mxu0 %v1977
      %v2129 = vpop.f32.mrf.mxu0
      %v2130 = vadd.f32 %v2026, %v2129
      %2131 = vmatmul.f32.gmra.mxu0 %v1978
      %v2132 = vpop.f32.mrf.mxu0
      %v2133 = vadd.f32 %v2026, %v2132
      %2134 = vmatmul.f32.gmra.mxu0 %v1979
      %v2135 = vpop.f32.mrf.mxu0
      %v2136 = vadd.f32 %v2026, %v2135
      %2137 = vmatmul.f32.gmra.mxu0 %v1980
      %v2138 = vpop.f32.mrf.mxu0
      %v2139 = vadd.f32 %v2026, %v2138
      %2140 = vmatmul.f32.gmra.mxu0 %v1981
      %v2141 = vpop.f32.mrf.mxu0
      %v2142 = vadd.f32 %v2026, %v2141
      %2143 = vmatmul.f32.gmra.mxu0 %v1982
      %v2144 = vpop.f32.mrf.mxu0
      %v2145 = vadd.f32 %v2026, %v2144
      %2146 = vmatmul.f32.gmra.mxu0 %v1983
      %v2147 = vpop.f32.mrf.mxu0
      %v2148 = vadd.f32 %v2026, %v2147
      %2149 = vmatmul.f32.gmra.mxu0 %v1984
      %v2150 = vpop.f32.mrf.mxu0
      %v2151 = vadd.f32 %v2026, %v2150
      %2152 = vmatmul.f32.gmra.mxu0 %v1985
      %v2153 = vpop.f32.mrf.mxu0
      %v2154 = vadd.f32 %v2026, %v2153
      %2155 = vmatmul.f32.gmra.mxu0 %v1986
      %v2156 = vpop.f32.mrf.mxu0
      %v2157 = vadd.f32 %v2026, %v2156
      %2158 = vmatmul.f32.gmra.mxu0 %v1987
      %v2159 = vpop.f32.mrf.mxu0
      %v2160 = vadd.f32 %v2026, %v2159
      %2161 = vmatmul.f32.gmra.mxu0 %v1988
      %v2162 = vpop.f32.mrf.mxu0
      %v2163 = vadd.f32 %v2026, %v2162
      %2164 = vmatmul.f32.gmra.mxu0 %v1989
      %v2165 = vpop.f32.mrf.mxu0
      %v2166 = vadd.f32 %v2026, %v2165
      %2167 = vmatmul.f32.gmra.mxu0 %v1990
      %v2168 = vpop.f32.mrf.mxu0
      %v2169 = vadd.f32 %v2026, %v2168
      %2170 = vdwg.mxu0
      %v2171 = vmax.f32 %v2047, 0.0
      %v2172 = vmax.f32 %v2050, 0.0
      %v2173 = vmax.f32 %v2053, 0.0
      %v2174 = vmax.f32 %v2056, 0.0
      %v2175 = vmax.f32 %v2059, 0.0
      %v2176 = vmax.f32 %v2062, 0.0
      %v2177 = vmax.f32 %v2065, 0.0
      %v2178 = vmax.f32 %v2068, 0.0
      %v2179 = vmax.f32 %v2071, 0.0
      %v2180 = vmax.f32 %v2074, 0.0
      %v2181 = vmax.f32 %v2077, 0.0
      %v2182 = vmax.f32 %v2080, 0.0
      %v2183 = vmax.f32 %v2083, 0.0
      %v2184 = vmax.f32 %v2086, 0.0
      %v2185 = vmax.f32 %v2089, 0.0
      %v2186 = vmax.f32 %v2092, 0.0
      %v2187 = vmax.f32 %v2095, 0.0
      %v2188 = vmax.f32 %v2098, 0.0
      %v2189 = vmax.f32 %v2118, 0.0
      %v2190 = vmax.f32 %v2121, 0.0
      %v2191 = vmax.f32 %v2124, 0.0
      %v2192 = vmax.f32 %v2127, 0.0
      %v2193 = vmax.f32 %v2130, 0.0
      %v2194 = vmax.f32 %v2133, 0.0
      %v2195 = vmax.f32 %v2136, 0.0
      %v2196 = vmax.f32 %v2139, 0.0
      %v2197 = vmax.f32 %v2142, 0.0
      %v2198 = vmax.f32 %v2145, 0.0
      %v2199 = vmax.f32 %v2148, 0.0
      %v2200 = vmax.f32 %v2151, 0.0
      %v2201 = vmax.f32 %v2154, 0.0
      %v2202 = vmax.f32 %v2157, 0.0
      %v2203 = vmax.f32 %v2160, 0.0
      %v2204 = vmax.f32 %v2163, 0.0
      %v2205 = vmax.f32 %v2166, 0.0
      %v2206 = vmax.f32 %v2169, 0.0
      %v2207 = vadd.f32 %v2171, %v2189
      %v2208 = vadd.f32 %v2172, %v2190
      %v2209 = vadd.f32 %v2173, %v2191
      %v2210 = vadd.f32 %v2174, %v2192
      %v2211 = vadd.f32 %v2175, %v2193
      %v2212 = vadd.f32 %v2176, %v2194
      %v2213 = vadd.f32 %v2177, %v2195
      %v2214 = vadd.f32 %v2178, %v2196
      %v2215 = vadd.f32 %v2179, %v2197
      %v2216 = vadd.f32 %v2180, %v2198
      %v2217 = vadd.f32 %v2181, %v2199
      %v2218 = vadd.f32 %v2182, %v2200
      %v2219 = vadd.f32 %v2183, %v2201
      %v2220 = vadd.f32 %v2184, %v2202
      %v2221 = vadd.f32 %v2185, %v2203
      %v2222 = vadd.f32 %v2186, %v2204
      %v2223 = vadd.f32 %v2187, %v2205
      %v2224 = vadd.f32 %v2188, %v2206
      %2225 = vst [vmem:[%s197 + $0xf0] sm:$0xff] %v2207
      %2226 = vst [vmem:[%s197 + $0xf8] sm:$0xff] %v2208
      %2227 = vst [vmem:[%s197 + $0x100] sm:$0xff] %v2209
      %2228 = vst [vmem:[%s197 + $0x108] sm:$0xff] %v2210
      %2229 = vst [vmem:[%s197 + $0x110] sm:$0xff] %v2211
      %2230 = vst [vmem:[%s197 + $0x118] sm:$0xff] %v2212
      %2231 = vst [vmem:[%s197 + $0x120] sm:$0xff] %v2213
      %2232 = vst [vmem:[%s197 + $0x128] sm:$0xff] %v2214
      %2233 = vst [vmem:[%s197 + $0x130] sm:$0xff] %v2215
      %2234 = vst [vmem:[%s197 + $0x138] sm:$0xff] %v2216
      %2235 = vst [vmem:[%s197 + $0x140] sm:$0xff] %v2217
      %2236 = vst [vmem:[%s197 + $0x148] sm:$0xff] %v2218
      %2237 = vst [vmem:[%s197 + $0x150] sm:$0xff] %v2219
      %2238 = vst [vmem:[%s197 + $0x158] sm:$0xff] %v2220
      %2239 = vst [vmem:[%s197 + $0x160] sm:$0xff] %v2221
      %2240 = vst [vmem:[%s197 + $0x168] sm:$0xff] %v2222
      %2241 = vst [vmem:[%s197 + $0x170] sm:$0xff] %v2223
      %2242 = vst [vmem:[%s197 + $0x178] sm:$0xff] %v2224
      %p2243 = scmp.lt.s32.totalorder %s15, 1
      %s2244 = scalar_select %p2243, %s15, 1
      %s2245 = smul.addr %s2244, 48
      %s2246 = smul.addr %s2245, 8
      %s2247 = scalar_lea.vmem %s4, %s2246
      // Predicated region
      $region37: #{adconv_forward.1} parent=35 // pred_check
        %p2248 = pneg %p122
      $region38: #{adconv_forward.1} parent=35 // pred_check_branch
        %2250 = sbr.rel (%p2248) target = $region40
      $region39: #{adconv_forward.1} parent=35 // pred_region
        _
      $region40: #{adconv_forward.1} parent=35 // pred_fallthru
        _
    $region36: #{adconv_forward.1} parent=5 // pred_fallthru
      _
    %p2251 = scmp.le.s32.totalorder 2, %s10
    // Predicated region
    $region41: #{adconv_forward.1} parent=5 // pred_check
      %p2252 = pneg %p2251
    $region42: #{adconv_forward.1} parent=5 // pred_check_branch
      %2254 = sbr.rel (%p2252) target = $region44
    $region43: #{adconv_forward.1} parent=5 // pred_region
      %s2255 = ssub.s32 %s10, 2
      // Predicated region
      $region45: #{adconv_forward.1} parent=43 // pred_check
        %p2256 = pneg %p128
      $region46: #{adconv_forward.1} parent=43 // pred_check_branch
        %2258 = sbr.rel (%p2256) target = $region48
      $region47: #{adconv_forward.1} parent=43 // pred_region
        %p2259 = scmp.lt.s32.totalorder %s16, 1
        %s2260 = scalar_select %p2259, %s16, 1
        %s2261 = smul.addr %s2260, 48
        %s2262 = smul.addr %s2261, 8
        %s2263 = scalar_lea.vmem %s4, %s2262
      $region48: #{adconv_forward.1} parent=43 // pred_fallthru
        _
    $region44: #{adconv_forward.1} parent=5 // pred_fallthru
      _
  $region6: #{adconv_forward.1} parent=0 // loop_footer
    %s14 = sadd.s32 1, %s10
  $region7: #{adconv_forward.1} parent=0 // loop_footer_branch
    %9 = sbr.rel target = $region3
  $region8: #{adconv_forward.1} parent=0 // loop_exit
    _

</llo_original>
